<compile_context>
chip_gen: v7x
topology: tpu7x:2x2x1
jax: 0.10.0
libtpu: 0.0.40
codegen_flags: <defaults>
</compile_context>

<pallas_src>
import functools

import jax
import jax.numpy as jnp
from jax.experimental import pallas as pl
from jax.experimental.pallas import tpu as pltpu


def _disc_fwd_kernel(x_ref, wi0_ref, b0_ref, wstep_ref, b1_ref,
                     wlin_ref, blin_ref, out_ref):
    """Fused Discriminator forward.

    x_ref    : (B, T, Dp)   input, Dp = input_dim zero-padded to a multiple of 8
    wi0_ref  : (Dp, 4H)     layer-0 input weights (gate order [i,f,o,g])
    b0_ref   : (1, 4H)      layer-0 bias (b_ih0 + b_hh0)
    wstep_ref: (2H, 8H)     fused per-step weight [[wi1, wh0],[wh1, 0]]
    b1_ref   : (1, 4H)      layer-1 bias (b_ih1 + b_hh1)
    wlin_ref : (1, H)       head weight row
    blin_ref : (1, 1)       head bias
    out_ref  : (B, T)       sigmoid(Linear(h1_t))
    """
    B, T, Dp = x_ref.shape
    H = wstep_ref.shape[0] // 2

    # Weights / biases hoisted once.  At H=32 wstep is ~16 vregs.
    # TODO(synk): for H >= 64 load wstep_ref at each use (or slice it) instead
    #             of pinning it in vregs across the whole unrolled loop.
    wstep = wstep_ref[...]                                      # (2H, 8H)
    b1b = jnp.broadcast_to(b1_ref[...], (B, 4 * H))             # hoisted out of loop
    wlin_b = jnp.broadcast_to(wlin_ref[...], (B, H))
    blin_b = jnp.broadcast_to(blin_ref[...], (B, 1))

    # ---- prologue: layer-0 input projection for ALL timesteps in one MXU op
    #      (off the serial chain; both reshapes are layout no-ops).
    x_flat = x_ref[...].reshape(B * T, Dp)
    gin0 = (jnp.dot(x_flat, wi0_ref[...], preferred_element_type=jnp.float32)
            + b0_ref[...]).reshape(B, T, 4 * H)

    def _sig(v):
        # logistic(x) == 0.5 * tanh(0.5 * x) + 0.5 : a single EUP push
        # (exp + reciprocal would be two); the mul/add ride the VPU slot.
        return 0.5 * jnp.tanh(0.5 * v) + 0.5

    def gates(g, c_prev):
        # gate lanes are pre-permuted to [i, f, o, g]:
        # one contiguous 3H-lane "sigmoid" + one H-lane tanh per cell.
        s = _sig(g[:, :3 * H])
        i = s[:, 0 * H:1 * H]
        f = s[:, 1 * H:2 * H]
        o = s[:, 2 * H:3 * H]
        gg = jnp.tanh(g[:, 3 * H:4 * H])
        c_new = f * c_prev + i * gg
        return o * jnp.tanh(c_new), c_new

    zeros_h = jnp.zeros((B, H), jnp.float32)
    rec0 = jnp.zeros((B, 4 * H), jnp.float32)    # h0(t-1) @ wh0, from fused matmul
    c0 = zeros_h
    h1 = zeros_h
    c1 = zeros_h
    probs = []

    # Static, fully unrolled time loop (T is small here): a flat trace lets the
    # LLO scheduler overlap layer-1 / head of step t with layer-0 of step t+1.
    # TODO(synk): for long T, switch to lax.fori_loop(..., unroll=4 or 8) with a
    #             (T, B, 4H) gin0 scratch ref to bound code size / live ranges.
    for t in range(T):
        # ---- layer 0: input projection precomputed; only the recurrent term
        #      (rec0 = h0(t-1) @ wh0, produced by last step's fused matmul)
        #      sits on the serial chain.
        g0 = gin0[:, t, :] + rec0
        h0, c0 = gates(g0, c0)

        # ---- ONE fused MXU matmul per step:
        #      [h0(t) | h1(t-1)] @ [[wi1, wh0],[wh1, 0]]
        #      -> first 4H lanes = layer-1 pre-activation (minus bias),
        #         last  4H lanes = layer-0 recurrent term for step t+1.
        lhs = jnp.concatenate([h0, h1], axis=-1)                    # (B, 2H)
        fused = jnp.dot(lhs, wstep, preferred_element_type=jnp.float32)  # (B, 8H)
        g1 = fused[:, :4 * H] + b1b
        rec0 = fused[:, 4 * H:]

        # ---- layer 1 (eval mode: nn.LSTM inter-layer dropout p=0.1 is
        #      train-time only, so no dropout here).
        h1, c1 = gates(g1, c1)

        # ---- head: Linear(H -> 1) + sigmoid.  No recurrent dependency, so it
        #      overlaps with the next step's work (VPU/XLU/EUP only).
        logit = jnp.sum(h1 * wlin_b, axis=-1, keepdims=True) + blin_b   # (B, 1)
        probs.append(_sig(logit))

    # Single (B, T) store; the wrapper only appends the trailing unit dim.
    # TODO(synk): at production B*T, emit a lane-dense (>=128-lane) output layout.
    out_ref[...] = jnp.concatenate(probs, axis=-1)


def init_params(key, input_dim, hidden_units, add_batch_mean=False):
    """Deterministic synthetic params matching nn.LSTM / nn.Linear shapes.

    Weights are stored in PyTorch's gate order [i, f, g, o]; LSTM weights are
    kept transposed, i.e. wi* is (D, 4H) = W_ih.T and wh* is (H, 4H) = W_hh.T.
    """
    extra = hidden_units if add_batch_mean else 0
    H = hidden_units + extra
    # TODO(synk): the original module keeps LSTM input_size=input_dim even
    # though its forward concatenates the batch mean; that path is inconsistent
    # in PyTorch itself, so only add_batch_mean=False is exercised.
    D = 2 * input_dim if add_batch_mean else input_dim
    k = iter(jax.random.split(key, 16))
    bound = 1.0 / jnp.sqrt(H)

    def uni(shape):
        return jax.random.uniform(next(k), shape, jnp.float32, -bound, bound)

    return {
        # layer 0
        "wi0": uni((D, 4 * H)),
        "wh0": uni((H, 4 * H)),
        "b0": (uni((1, 4 * H)) + uni((1, 4 * H))),        # b_ih0 + b_hh0
        # layer 1
        "wi1": uni((H, 4 * H)),
        "wh1": uni((H, 4 * H)),
        "b1": (uni((1, 4 * H)) + uni((1, 4 * H))),        # b_ih1 + b_hh1
        # linear head: trunc_normal_ like the module
        "wlin": jax.random.truncated_normal(next(k), -2.0, 2.0,
                                            (H, 1), jnp.float32),
        "blin": jax.random.truncated_normal(next(k), -2.0, 2.0,
                                            (1, 1), jnp.float32),
    }


def prepare_params(params):
    """ONE-TIME parameter preprocessing (hoisted out of the forward pass):
      * permute gate columns PyTorch [i, f, g, o] -> [i, f, o, g],
      * build the fused per-step weight [[wi1, wh0],[wh1, 0]]  (2H, 8H),
      * zero-pad the layer-0 input-projection contraction dim to a multiple of 8,
      * pre-transpose the head weight to a (1, H) row.
    """
    H = params["wh0"].shape[0]
    D = params["wi0"].shape[0]
    perm = jnp.concatenate([jnp.arange(0, 2 * H),
                            jnp.arange(3 * H, 4 * H),
                            jnp.arange(2 * H, 3 * H)])
    wi0 = params["wi0"][:, perm]
    wh0 = params["wh0"][:, perm]
    b0 = params["b0"][:, perm]
    wi1 = params["wi1"][:, perm]
    wh1 = params["wh1"][:, perm]
    b1 = params["b1"][:, perm]

    dp = max(8, -(-D // 8) * 8)                  # sublane-aligned contraction dim
    wi0p = jnp.zeros((dp, 4 * H), jnp.float32).at[:D, :].set(wi0)

    wstep = jnp.concatenate(
        [jnp.concatenate([wi1, wh0], axis=1),
         jnp.concatenate([wh1, jnp.zeros_like(wh1)], axis=1)], axis=0)

    # TODO(synk): for v6e/v7x throughput, also store bf16 copies of wi0p/wstep
    #             and cast the MXU LHS to bf16 (loosens the f32 tolerance).
    return {
        "wi0": wi0p,                              # (Dp, 4H)
        "b0": b0,                                 # (1, 4H)
        "wstep": wstep,                           # (2H, 8H)
        "b1": b1,                                 # (1, 4H)
        "wlin_row": params["wlin"].T,             # (1, H)
        "blin": params["blin"],                   # (1, 1)
    }


@functools.partial(jax.jit, static_argnames=("add_batch_mean",))
def discriminator_forward(x, prep, add_batch_mean=False):
    """x: (B, T, input_dim) float32, batch_first like the PyTorch module."""
    if add_batch_mean:
        # TODO(synk): the module's add_batch_mean path feeds 2*input_dim
        # features into an LSTM declared with input_size=input_dim — that path
        # is inconsistent in the original PyTorch module, so it is guarded here.
        raise NotImplementedError("add_batch_mean=True is not supported")
    x = x.astype(jnp.float32)
    B, T, D = x.shape
    dp = prep["wi0"].shape[0]
    if D < dp:                                    # align the projection K dim
        x = jnp.pad(x, ((0, 0), (0, 0), (0, dp - D)))

    # TODO(synk): for production B / T, grid over batch tiles
    # (dimension_semantics=("parallel",) -> 2x on v7x's two cores), chunk gin0
    # over T with a BlockSpec instead of full-array VMEM residency, and set
    # pltpu.CompilerParams(vmem_limit_bytes=...) with double-buffering headroom.
    out_bt = pl.pallas_call(
        _disc_fwd_kernel,
        out_shape=jax.ShapeDtypeStruct((B, T), jnp.float32),
        in_specs=[pl.BlockSpec(memory_space=pltpu.MemorySpace.VMEM)] * 7,
        out_specs=pl.BlockSpec(memory_space=pltpu.MemorySpace.VMEM),
    )(x, prep["wi0"], prep["b0"], prep["wstep"], prep["b1"],
      prep["wlin_row"], prep["blin"])
    return out_bt[..., None]                      # (B, T, 1)


def _reference_forward(x, params, add_batch_mean=False):
    """Pure-JAX reference of the PyTorch math (gate order [i, f, g, o])."""
    x = x.astype(jnp.float32)
    if add_batch_mean:
        bm = jnp.mean(x, axis=0, keepdims=True)
        x = jnp.concatenate([x, jnp.broadcast_to(bm, x.shape)], axis=-1)
    B, T, _ = x.shape
    H = params["wh0"].shape[0]

    def cell(x_t, h, c, wi, wh, b):
        g = x_t @ wi + h @ wh + b
        i = jax.nn.sigmoid(g[:, 0 * H:1 * H])
        f = jax.nn.sigmoid(g[:, 1 * H:2 * H])
        gg = jnp.tanh(g[:, 2 * H:3 * H])
        o = jax.nn.sigmoid(g[:, 3 * H:4 * H])
        c_new = f * c + i * gg
        return o * jnp.tanh(c_new), c_new

    h0 = c0 = h1 = c1 = jnp.zeros((B, H), jnp.float32)
    outs = []
    for t in range(T):
        h0, c0 = cell(x[:, t, :], h0, c0,
                      params["wi0"], params["wh0"], params["b0"])
        h1, c1 = cell(h0, h1, c1,
                      params["wi1"], params["wh1"], params["b1"])
        outs.append(jax.nn.sigmoid(h1 @ params["wlin"] + params["blin"]))
    return jnp.stack(outs, axis=1)                 # (B, T, 1)


if __name__ == "__main__":
    # Small shapes consistent with the module defaults:
    #   input_dim=6, hidden_units=32, n_lstm_layers=2, add_batch_mean=False
    B, T, INPUT_DIM, HIDDEN = 2, 8, 6, 32

    key = jax.random.PRNGKey(0)
    kx, kp = jax.random.split(key)
    x = jax.random.normal(kx, (B, T, INPUT_DIM), jnp.float32)
    params = init_params(kp, INPUT_DIM, HIDDEN, add_batch_mean=False)

    prep = prepare_params(params)                  # one-time preprocessing
    out = discriminator_forward(x, prep)
    out = jax.block_until_ready(out)

    ref = _reference_forward(x, params)
    assert out.shape == (B, T, 1), out.shape
    err = float(jnp.max(jnp.abs(out - ref)))
    assert err < 5e-5, f"mismatch vs. JAX reference: {err}"

    print("KERNEL_OK")
</pallas_src>

<mosaic_0001>
module attributes {stable_mosaic.version = 11 : i64} {
  func.func @_disc_fwd_kernel(%arg0: memref<2x8x8xf32, #tpu.memory_space<vmem>>, %arg1: memref<8x128xf32, #tpu.memory_space<vmem>>, %arg2: memref<1x128xf32, #tpu.memory_space<vmem>>, %arg3: memref<64x256xf32, #tpu.memory_space<vmem>>, %arg4: memref<1x128xf32, #tpu.memory_space<vmem>>, %arg5: memref<1x32xf32, #tpu.memory_space<vmem>>, %arg6: memref<1x1xf32, #tpu.memory_space<vmem>>, %arg7: memref<2x8xf32, #tpu.memory_space<vmem>>) attributes {dimension_semantics = [], scalar_prefetch = 0 : i64, scratch_operands = 0 : i64, tpu.core_type = #tpu.core_type<tc>} {
    %c0 = arith.constant 0 : index
    %c0_0 = arith.constant 0 : index
    %0 = vector.load %arg3[%c0, %c0_0] : memref<64x256xf32, #tpu.memory_space<vmem>>, vector<64x256xf32>
    %c0_1 = arith.constant 0 : index
    %c0_2 = arith.constant 0 : index
    %1 = vector.load %arg4[%c0_1, %c0_2] : memref<1x128xf32, #tpu.memory_space<vmem>>, vector<1x128xf32>
    %2 = vector.shape_cast %1 : vector<1x128xf32> to vector<1x128xf32>
    %3 = vector.broadcast %2 : vector<1x128xf32> to vector<2x128xf32>
    %c0_3 = arith.constant 0 : index
    %c0_4 = arith.constant 0 : index
    %4 = vector.load %arg5[%c0_3, %c0_4] : memref<1x32xf32, #tpu.memory_space<vmem>>, vector<1x32xf32>
    %5 = vector.shape_cast %4 : vector<1x32xf32> to vector<1x32xf32>
    %6 = vector.broadcast %5 : vector<1x32xf32> to vector<2x32xf32>
    %c0_5 = arith.constant 0 : index
    %c0_6 = arith.constant 0 : index
    %7 = vector.load %arg6[%c0_5, %c0_6] : memref<1x1xf32, #tpu.memory_space<vmem>>, vector<1x1xf32>
    %8 = vector.shape_cast %7 : vector<1x1xf32> to vector<1x1xf32>
    %9 = vector.broadcast %8 : vector<1x1xf32> to vector<2x1xf32>
    %c0_7 = arith.constant 0 : index
    %c0_8 = arith.constant 0 : index
    %c0_9 = arith.constant 0 : index
    %10 = vector.load %arg0[%c0_7, %c0_8, %c0_9] : memref<2x8x8xf32, #tpu.memory_space<vmem>>, vector<2x8x8xf32>
    %11 = vector.shape_cast %10 : vector<2x8x8xf32> to vector<16x8xf32>
    %c0_10 = arith.constant 0 : index
    %c0_11 = arith.constant 0 : index
    %12 = vector.load %arg1[%c0_10, %c0_11] : memref<8x128xf32, #tpu.memory_space<vmem>>, vector<8x128xf32>
    %cst = arith.constant dense<0.000000e+00> : vector<16x128xf32>
    %13 = tpu.matmul %11, %12, %cst {dimension_numbers = #tpu.dot_dimension_numbers<[1], [0], [0], [1], [0, 0, 1, 1], [], []>} : vector<16x8xf32>, vector<8x128xf32>, vector<16x128xf32> -> vector<16x128xf32>
    %c0_12 = arith.constant 0 : index
    %c0_13 = arith.constant 0 : index
    %14 = vector.load %arg2[%c0_12, %c0_13] : memref<1x128xf32, #tpu.memory_space<vmem>>, vector<1x128xf32>
    %15 = vector.broadcast %14 : vector<1x128xf32> to vector<16x128xf32>
    %16 = arith.addf %13, %15 : vector<16x128xf32>
    %17 = vector.shape_cast %16 : vector<16x128xf32> to vector<2x8x128xf32>
    %cst_14 = arith.constant 0.000000e+00 : f32
    %18 = vector.broadcast %cst_14 : f32 to vector<2x32xf32>
    %cst_15 = arith.constant 0.000000e+00 : f32
    %19 = vector.broadcast %cst_15 : f32 to vector<2x128xf32>
    %20 = vector.extract_strided_slice %17 {offsets = [0, 0, 0], sizes = [2, 1, 128], strides = [1, 1, 1]} : vector<2x8x128xf32> to vector<2x1x128xf32>
    %21 = vector.shape_cast %20 : vector<2x1x128xf32> to vector<2x128xf32>
    %22 = arith.addf %21, %19 : vector<2x128xf32>
    %23 = vector.extract_strided_slice %22 {offsets = [0, 0], sizes = [2, 96], strides = [1, 1]} : vector<2x128xf32> to vector<2x96xf32>
    %cst_16 = arith.constant 5.000000e-01 : f32
    %24 = vector.broadcast %cst_16 : f32 to vector<2x96xf32>
    %25 = arith.mulf %24, %23 : vector<2x96xf32>
    %26 = math.tanh %25 : vector<2x96xf32>
    %cst_17 = arith.constant 5.000000e-01 : f32
    %27 = vector.broadcast %cst_17 : f32 to vector<2x96xf32>
    %28 = arith.mulf %27, %26 : vector<2x96xf32>
    %cst_18 = arith.constant 5.000000e-01 : f32
    %29 = vector.broadcast %cst_18 : f32 to vector<2x96xf32>
    %30 = arith.addf %28, %29 : vector<2x96xf32>
    %31 = vector.extract_strided_slice %30 {offsets = [0, 0], sizes = [2, 32], strides = [1, 1]} : vector<2x96xf32> to vector<2x32xf32>
    %32 = vector.extract_strided_slice %30 {offsets = [0, 32], sizes = [2, 32], strides = [1, 1]} : vector<2x96xf32> to vector<2x32xf32>
    %33 = vector.extract_strided_slice %30 {offsets = [0, 64], sizes = [2, 32], strides = [1, 1]} : vector<2x96xf32> to vector<2x32xf32>
    %34 = vector.extract_strided_slice %22 {offsets = [0, 96], sizes = [2, 32], strides = [1, 1]} : vector<2x128xf32> to vector<2x32xf32>
    %35 = math.tanh %34 : vector<2x32xf32>
    %36 = arith.mulf %32, %18 : vector<2x32xf32>
    %37 = arith.mulf %31, %35 : vector<2x32xf32>
    %38 = arith.addf %36, %37 : vector<2x32xf32>
    %39 = math.tanh %38 : vector<2x32xf32>
    %40 = arith.mulf %33, %39 : vector<2x32xf32>
    %41 = tpu.concatenate %40, %18 in 1 : vector<2x32xf32>, vector<2x32xf32> -> vector<2x64xf32>
    %cst_19 = arith.constant dense<0.000000e+00> : vector<2x256xf32>
    %42 = tpu.matmul %41, %0, %cst_19 {dimension_numbers = #tpu.dot_dimension_numbers<[1], [0], [0], [1], [0, 0, 1, 1], [], []>} : vector<2x64xf32>, vector<64x256xf32>, vector<2x256xf32> -> vector<2x256xf32>
    %43 = vector.extract_strided_slice %42 {offsets = [0, 0], sizes = [2, 128], strides = [1, 1]} : vector<2x256xf32> to vector<2x128xf32>
    %44 = arith.addf %43, %3 : vector<2x128xf32>
    %45 = vector.extract_strided_slice %42 {offsets = [0, 128], sizes = [2, 128], strides = [1, 1]} : vector<2x256xf32> to vector<2x128xf32>
    %46 = vector.extract_strided_slice %44 {offsets = [0, 0], sizes = [2, 96], strides = [1, 1]} : vector<2x128xf32> to vector<2x96xf32>
    %cst_20 = arith.constant 5.000000e-01 : f32
    %47 = vector.broadcast %cst_20 : f32 to vector<2x96xf32>
    %48 = arith.mulf %47, %46 : vector<2x96xf32>
    %49 = math.tanh %48 : vector<2x96xf32>
    %cst_21 = arith.constant 5.000000e-01 : f32
    %50 = vector.broadcast %cst_21 : f32 to vector<2x96xf32>
    %51 = arith.mulf %50, %49 : vector<2x96xf32>
    %cst_22 = arith.constant 5.000000e-01 : f32
    %52 = vector.broadcast %cst_22 : f32 to vector<2x96xf32>
    %53 = arith.addf %51, %52 : vector<2x96xf32>
    %54 = vector.extract_strided_slice %53 {offsets = [0, 0], sizes = [2, 32], strides = [1, 1]} : vector<2x96xf32> to vector<2x32xf32>
    %55 = vector.extract_strided_slice %53 {offsets = [0, 32], sizes = [2, 32], strides = [1, 1]} : vector<2x96xf32> to vector<2x32xf32>
    %56 = vector.extract_strided_slice %53 {offsets = [0, 64], sizes = [2, 32], strides = [1, 1]} : vector<2x96xf32> to vector<2x32xf32>
    %57 = vector.extract_strided_slice %44 {offsets = [0, 96], sizes = [2, 32], strides = [1, 1]} : vector<2x128xf32> to vector<2x32xf32>
    %58 = math.tanh %57 : vector<2x32xf32>
    %59 = arith.mulf %55, %18 : vector<2x32xf32>
    %60 = arith.mulf %54, %58 : vector<2x32xf32>
    %61 = arith.addf %59, %60 : vector<2x32xf32>
    %62 = math.tanh %61 : vector<2x32xf32>
    %63 = arith.mulf %56, %62 : vector<2x32xf32>
    %64 = arith.mulf %63, %6 : vector<2x32xf32>
    %cst_23 = arith.constant dense<0.000000e+00> : vector<2xf32>
    %65 = vector.multi_reduction <add>, %64, %cst_23 [1] : vector<2x32xf32> to vector<2xf32>
    %66 = vector.shape_cast %65 : vector<2xf32> to vector<2x1xf32>
    %67 = arith.addf %66, %9 : vector<2x1xf32>
    %cst_24 = arith.constant 5.000000e-01 : f32
    %68 = vector.broadcast %cst_24 : f32 to vector<2x1xf32>
    %69 = arith.mulf %68, %67 : vector<2x1xf32>
    %70 = math.tanh %69 : vector<2x1xf32>
    %cst_25 = arith.constant 5.000000e-01 : f32
    %71 = vector.broadcast %cst_25 : f32 to vector<2x1xf32>
    %72 = arith.mulf %71, %70 : vector<2x1xf32>
    %cst_26 = arith.constant 5.000000e-01 : f32
    %73 = vector.broadcast %cst_26 : f32 to vector<2x1xf32>
    %74 = arith.addf %72, %73 : vector<2x1xf32>
    %75 = vector.extract_strided_slice %17 {offsets = [0, 1, 0], sizes = [2, 1, 128], strides = [1, 1, 1]} : vector<2x8x128xf32> to vector<2x1x128xf32>
    %76 = vector.shape_cast %75 : vector<2x1x128xf32> to vector<2x128xf32>
    %77 = arith.addf %76, %45 : vector<2x128xf32>
    %78 = vector.extract_strided_slice %77 {offsets = [0, 0], sizes = [2, 96], strides = [1, 1]} : vector<2x128xf32> to vector<2x96xf32>
    %cst_27 = arith.constant 5.000000e-01 : f32
    %79 = vector.broadcast %cst_27 : f32 to vector<2x96xf32>
    %80 = arith.mulf %79, %78 : vector<2x96xf32>
    %81 = math.tanh %80 : vector<2x96xf32>
    %cst_28 = arith.constant 5.000000e-01 : f32
    %82 = vector.broadcast %cst_28 : f32 to vector<2x96xf32>
    %83 = arith.mulf %82, %81 : vector<2x96xf32>
    %cst_29 = arith.constant 5.000000e-01 : f32
    %84 = vector.broadcast %cst_29 : f32 to vector<2x96xf32>
    %85 = arith.addf %83, %84 : vector<2x96xf32>
    %86 = vector.extract_strided_slice %85 {offsets = [0, 0], sizes = [2, 32], strides = [1, 1]} : vector<2x96xf32> to vector<2x32xf32>
    %87 = vector.extract_strided_slice %85 {offsets = [0, 32], sizes = [2, 32], strides = [1, 1]} : vector<2x96xf32> to vector<2x32xf32>
    %88 = vector.extract_strided_slice %85 {offsets = [0, 64], sizes = [2, 32], strides = [1, 1]} : vector<2x96xf32> to vector<2x32xf32>
    %89 = vector.extract_strided_slice %77 {offsets = [0, 96], sizes = [2, 32], strides = [1, 1]} : vector<2x128xf32> to vector<2x32xf32>
    %90 = math.tanh %89 : vector<2x32xf32>
    %91 = arith.mulf %87, %38 : vector<2x32xf32>
    %92 = arith.mulf %86, %90 : vector<2x32xf32>
    %93 = arith.addf %91, %92 : vector<2x32xf32>
    %94 = math.tanh %93 : vector<2x32xf32>
    %95 = arith.mulf %88, %94 : vector<2x32xf32>
    %96 = tpu.concatenate %95, %63 in 1 : vector<2x32xf32>, vector<2x32xf32> -> vector<2x64xf32>
    %cst_30 = arith.constant dense<0.000000e+00> : vector<2x256xf32>
    %97 = tpu.matmul %96, %0, %cst_30 {dimension_numbers = #tpu.dot_dimension_numbers<[1], [0], [0], [1], [0, 0, 1, 1], [], []>} : vector<2x64xf32>, vector<64x256xf32>, vector<2x256xf32> -> vector<2x256xf32>
    %98 = vector.extract_strided_slice %97 {offsets = [0, 0], sizes = [2, 128], strides = [1, 1]} : vector<2x256xf32> to vector<2x128xf32>
    %99 = arith.addf %98, %3 : vector<2x128xf32>
    %100 = vector.extract_strided_slice %97 {offsets = [0, 128], sizes = [2, 128], strides = [1, 1]} : vector<2x256xf32> to vector<2x128xf32>
    %101 = vector.extract_strided_slice %99 {offsets = [0, 0], sizes = [2, 96], strides = [1, 1]} : vector<2x128xf32> to vector<2x96xf32>
    %cst_31 = arith.constant 5.000000e-01 : f32
    %102 = vector.broadcast %cst_31 : f32 to vector<2x96xf32>
    %103 = arith.mulf %102, %101 : vector<2x96xf32>
    %104 = math.tanh %103 : vector<2x96xf32>
    %cst_32 = arith.constant 5.000000e-01 : f32
    %105 = vector.broadcast %cst_32 : f32 to vector<2x96xf32>
    %106 = arith.mulf %105, %104 : vector<2x96xf32>
    %cst_33 = arith.constant 5.000000e-01 : f32
    %107 = vector.broadcast %cst_33 : f32 to vector<2x96xf32>
    %108 = arith.addf %106, %107 : vector<2x96xf32>
    %109 = vector.extract_strided_slice %108 {offsets = [0, 0], sizes = [2, 32], strides = [1, 1]} : vector<2x96xf32> to vector<2x32xf32>
    %110 = vector.extract_strided_slice %108 {offsets = [0, 32], sizes = [2, 32], strides = [1, 1]} : vector<2x96xf32> to vector<2x32xf32>
    %111 = vector.extract_strided_slice %108 {offsets = [0, 64], sizes = [2, 32], strides = [1, 1]} : vector<2x96xf32> to vector<2x32xf32>
    %112 = vector.extract_strided_slice %99 {offsets = [0, 96], sizes = [2, 32], strides = [1, 1]} : vector<2x128xf32> to vector<2x32xf32>
    %113 = math.tanh %112 : vector<2x32xf32>
    %114 = arith.mulf %110, %61 : vector<2x32xf32>
    %115 = arith.mulf %109, %113 : vector<2x32xf32>
    %116 = arith.addf %114, %115 : vector<2x32xf32>
    %117 = math.tanh %116 : vector<2x32xf32>
    %118 = arith.mulf %111, %117 : vector<2x32xf32>
    %119 = arith.mulf %118, %6 : vector<2x32xf32>
    %cst_34 = arith.constant dense<0.000000e+00> : vector<2xf32>
    %120 = vector.multi_reduction <add>, %119, %cst_34 [1] : vector<2x32xf32> to vector<2xf32>
    %121 = vector.shape_cast %120 : vector<2xf32> to vector<2x1xf32>
    %122 = arith.addf %121, %9 : vector<2x1xf32>
    %cst_35 = arith.constant 5.000000e-01 : f32
    %123 = vector.broadcast %cst_35 : f32 to vector<2x1xf32>
    %124 = arith.mulf %123, %122 : vector<2x1xf32>
    %125 = math.tanh %124 : vector<2x1xf32>
    %cst_36 = arith.constant 5.000000e-01 : f32
    %126 = vector.broadcast %cst_36 : f32 to vector<2x1xf32>
    %127 = arith.mulf %126, %125 : vector<2x1xf32>
    %cst_37 = arith.constant 5.000000e-01 : f32
    %128 = vector.broadcast %cst_37 : f32 to vector<2x1xf32>
    %129 = arith.addf %127, %128 : vector<2x1xf32>
    %130 = vector.extract_strided_slice %17 {offsets = [0, 2, 0], sizes = [2, 1, 128], strides = [1, 1, 1]} : vector<2x8x128xf32> to vector<2x1x128xf32>
    %131 = vector.shape_cast %130 : vector<2x1x128xf32> to vector<2x128xf32>
    %132 = arith.addf %131, %100 : vector<2x128xf32>
    %133 = vector.extract_strided_slice %132 {offsets = [0, 0], sizes = [2, 96], strides = [1, 1]} : vector<2x128xf32> to vector<2x96xf32>
    %cst_38 = arith.constant 5.000000e-01 : f32
    %134 = vector.broadcast %cst_38 : f32 to vector<2x96xf32>
    %135 = arith.mulf %134, %133 : vector<2x96xf32>
    %136 = math.tanh %135 : vector<2x96xf32>
    %cst_39 = arith.constant 5.000000e-01 : f32
    %137 = vector.broadcast %cst_39 : f32 to vector<2x96xf32>
    %138 = arith.mulf %137, %136 : vector<2x96xf32>
    %cst_40 = arith.constant 5.000000e-01 : f32
    %139 = vector.broadcast %cst_40 : f32 to vector<2x96xf32>
    %140 = arith.addf %138, %139 : vector<2x96xf32>
    %141 = vector.extract_strided_slice %140 {offsets = [0, 0], sizes = [2, 32], strides = [1, 1]} : vector<2x96xf32> to vector<2x32xf32>
    %142 = vector.extract_strided_slice %140 {offsets = [0, 32], sizes = [2, 32], strides = [1, 1]} : vector<2x96xf32> to vector<2x32xf32>
    %143 = vector.extract_strided_slice %140 {offsets = [0, 64], sizes = [2, 32], strides = [1, 1]} : vector<2x96xf32> to vector<2x32xf32>
    %144 = vector.extract_strided_slice %132 {offsets = [0, 96], sizes = [2, 32], strides = [1, 1]} : vector<2x128xf32> to vector<2x32xf32>
    %145 = math.tanh %144 : vector<2x32xf32>
    %146 = arith.mulf %142, %93 : vector<2x32xf32>
    %147 = arith.mulf %141, %145 : vector<2x32xf32>
    %148 = arith.addf %146, %147 : vector<2x32xf32>
    %149 = math.tanh %148 : vector<2x32xf32>
    %150 = arith.mulf %143, %149 : vector<2x32xf32>
    %151 = tpu.concatenate %150, %118 in 1 : vector<2x32xf32>, vector<2x32xf32> -> vector<2x64xf32>
    %cst_41 = arith.constant dense<0.000000e+00> : vector<2x256xf32>
    %152 = tpu.matmul %151, %0, %cst_41 {dimension_numbers = #tpu.dot_dimension_numbers<[1], [0], [0], [1], [0, 0, 1, 1], [], []>} : vector<2x64xf32>, vector<64x256xf32>, vector<2x256xf32> -> vector<2x256xf32>
    %153 = vector.extract_strided_slice %152 {offsets = [0, 0], sizes = [2, 128], strides = [1, 1]} : vector<2x256xf32> to vector<2x128xf32>
    %154 = arith.addf %153, %3 : vector<2x128xf32>
    %155 = vector.extract_strided_slice %152 {offsets = [0, 128], sizes = [2, 128], strides = [1, 1]} : vector<2x256xf32> to vector<2x128xf32>
    %156 = vector.extract_strided_slice %154 {offsets = [0, 0], sizes = [2, 96], strides = [1, 1]} : vector<2x128xf32> to vector<2x96xf32>
    %cst_42 = arith.constant 5.000000e-01 : f32
    %157 = vector.broadcast %cst_42 : f32 to vector<2x96xf32>
    %158 = arith.mulf %157, %156 : vector<2x96xf32>
    %159 = math.tanh %158 : vector<2x96xf32>
    %cst_43 = arith.constant 5.000000e-01 : f32
    %160 = vector.broadcast %cst_43 : f32 to vector<2x96xf32>
    %161 = arith.mulf %160, %159 : vector<2x96xf32>
    %cst_44 = arith.constant 5.000000e-01 : f32
    %162 = vector.broadcast %cst_44 : f32 to vector<2x96xf32>
    %163 = arith.addf %161, %162 : vector<2x96xf32>
    %164 = vector.extract_strided_slice %163 {offsets = [0, 0], sizes = [2, 32], strides = [1, 1]} : vector<2x96xf32> to vector<2x32xf32>
    %165 = vector.extract_strided_slice %163 {offsets = [0, 32], sizes = [2, 32], strides = [1, 1]} : vector<2x96xf32> to vector<2x32xf32>
    %166 = vector.extract_strided_slice %163 {offsets = [0, 64], sizes = [2, 32], strides = [1, 1]} : vector<2x96xf32> to vector<2x32xf32>
    %167 = vector.extract_strided_slice %154 {offsets = [0, 96], sizes = [2, 32], strides = [1, 1]} : vector<2x128xf32> to vector<2x32xf32>
    %168 = math.tanh %167 : vector<2x32xf32>
    %169 = arith.mulf %165, %116 : vector<2x32xf32>
    %170 = arith.mulf %164, %168 : vector<2x32xf32>
    %171 = arith.addf %169, %170 : vector<2x32xf32>
    %172 = math.tanh %171 : vector<2x32xf32>
    %173 = arith.mulf %166, %172 : vector<2x32xf32>
    %174 = arith.mulf %173, %6 : vector<2x32xf32>
    %cst_45 = arith.constant dense<0.000000e+00> : vector<2xf32>
    %175 = vector.multi_reduction <add>, %174, %cst_45 [1] : vector<2x32xf32> to vector<2xf32>
    %176 = vector.shape_cast %175 : vector<2xf32> to vector<2x1xf32>
    %177 = arith.addf %176, %9 : vector<2x1xf32>
    %cst_46 = arith.constant 5.000000e-01 : f32
    %178 = vector.broadcast %cst_46 : f32 to vector<2x1xf32>
    %179 = arith.mulf %178, %177 : vector<2x1xf32>
    %180 = math.tanh %179 : vector<2x1xf32>
    %cst_47 = arith.constant 5.000000e-01 : f32
    %181 = vector.broadcast %cst_47 : f32 to vector<2x1xf32>
    %182 = arith.mulf %181, %180 : vector<2x1xf32>
    %cst_48 = arith.constant 5.000000e-01 : f32
    %183 = vector.broadcast %cst_48 : f32 to vector<2x1xf32>
    %184 = arith.addf %182, %183 : vector<2x1xf32>
    %185 = vector.extract_strided_slice %17 {offsets = [0, 3, 0], sizes = [2, 1, 128], strides = [1, 1, 1]} : vector<2x8x128xf32> to vector<2x1x128xf32>
    %186 = vector.shape_cast %185 : vector<2x1x128xf32> to vector<2x128xf32>
    %187 = arith.addf %186, %155 : vector<2x128xf32>
    %188 = vector.extract_strided_slice %187 {offsets = [0, 0], sizes = [2, 96], strides = [1, 1]} : vector<2x128xf32> to vector<2x96xf32>
    %cst_49 = arith.constant 5.000000e-01 : f32
    %189 = vector.broadcast %cst_49 : f32 to vector<2x96xf32>
    %190 = arith.mulf %189, %188 : vector<2x96xf32>
    %191 = math.tanh %190 : vector<2x96xf32>
    %cst_50 = arith.constant 5.000000e-01 : f32
    %192 = vector.broadcast %cst_50 : f32 to vector<2x96xf32>
    %193 = arith.mulf %192, %191 : vector<2x96xf32>
    %cst_51 = arith.constant 5.000000e-01 : f32
    %194 = vector.broadcast %cst_51 : f32 to vector<2x96xf32>
    %195 = arith.addf %193, %194 : vector<2x96xf32>
    %196 = vector.extract_strided_slice %195 {offsets = [0, 0], sizes = [2, 32], strides = [1, 1]} : vector<2x96xf32> to vector<2x32xf32>
    %197 = vector.extract_strided_slice %195 {offsets = [0, 32], sizes = [2, 32], strides = [1, 1]} : vector<2x96xf32> to vector<2x32xf32>
    %198 = vector.extract_strided_slice %195 {offsets = [0, 64], sizes = [2, 32], strides = [1, 1]} : vector<2x96xf32> to vector<2x32xf32>
    %199 = vector.extract_strided_slice %187 {offsets = [0, 96], sizes = [2, 32], strides = [1, 1]} : vector<2x128xf32> to vector<2x32xf32>
    %200 = math.tanh %199 : vector<2x32xf32>
    %201 = arith.mulf %197, %148 : vector<2x32xf32>
    %202 = arith.mulf %196, %200 : vector<2x32xf32>
    %203 = arith.addf %201, %202 : vector<2x32xf32>
    %204 = math.tanh %203 : vector<2x32xf32>
    %205 = arith.mulf %198, %204 : vector<2x32xf32>
    %206 = tpu.concatenate %205, %173 in 1 : vector<2x32xf32>, vector<2x32xf32> -> vector<2x64xf32>
    %cst_52 = arith.constant dense<0.000000e+00> : vector<2x256xf32>
    %207 = tpu.matmul %206, %0, %cst_52 {dimension_numbers = #tpu.dot_dimension_numbers<[1], [0], [0], [1], [0, 0, 1, 1], [], []>} : vector<2x64xf32>, vector<64x256xf32>, vector<2x256xf32> -> vector<2x256xf32>
    %208 = vector.extract_strided_slice %207 {offsets = [0, 0], sizes = [2, 128], strides = [1, 1]} : vector<2x256xf32> to vector<2x128xf32>
    %209 = arith.addf %208, %3 : vector<2x128xf32>
    %210 = vector.extract_strided_slice %207 {offsets = [0, 128], sizes = [2, 128], strides = [1, 1]} : vector<2x256xf32> to vector<2x128xf32>
    %211 = vector.extract_strided_slice %209 {offsets = [0, 0], sizes = [2, 96], strides = [1, 1]} : vector<2x128xf32> to vector<2x96xf32>
    %cst_53 = arith.constant 5.000000e-01 : f32
    %212 = vector.broadcast %cst_53 : f32 to vector<2x96xf32>
    %213 = arith.mulf %212, %211 : vector<2x96xf32>
    %214 = math.tanh %213 : vector<2x96xf32>
    %cst_54 = arith.constant 5.000000e-01 : f32
    %215 = vector.broadcast %cst_54 : f32 to vector<2x96xf32>
    %216 = arith.mulf %215, %214 : vector<2x96xf32>
    %cst_55 = arith.constant 5.000000e-01 : f32
    %217 = vector.broadcast %cst_55 : f32 to vector<2x96xf32>
    %218 = arith.addf %216, %217 : vector<2x96xf32>
    %219 = vector.extract_strided_slice %218 {offsets = [0, 0], sizes = [2, 32], strides = [1, 1]} : vector<2x96xf32> to vector<2x32xf32>
    %220 = vector.extract_strided_slice %218 {offsets = [0, 32], sizes = [2, 32], strides = [1, 1]} : vector<2x96xf32> to vector<2x32xf32>
    %221 = vector.extract_strided_slice %218 {offsets = [0, 64], sizes = [2, 32], strides = [1, 1]} : vector<2x96xf32> to vector<2x32xf32>
    %222 = vector.extract_strided_slice %209 {offsets = [0, 96], sizes = [2, 32], strides = [1, 1]} : vector<2x128xf32> to vector<2x32xf32>
    %223 = math.tanh %222 : vector<2x32xf32>
    %224 = arith.mulf %220, %171 : vector<2x32xf32>
    %225 = arith.mulf %219, %223 : vector<2x32xf32>
    %226 = arith.addf %224, %225 : vector<2x32xf32>
    %227 = math.tanh %226 : vector<2x32xf32>
    %228 = arith.mulf %221, %227 : vector<2x32xf32>
    %229 = arith.mulf %228, %6 : vector<2x32xf32>
    %cst_56 = arith.constant dense<0.000000e+00> : vector<2xf32>
    %230 = vector.multi_reduction <add>, %229, %cst_56 [1] : vector<2x32xf32> to vector<2xf32>
    %231 = vector.shape_cast %230 : vector<2xf32> to vector<2x1xf32>
    %232 = arith.addf %231, %9 : vector<2x1xf32>
    %cst_57 = arith.constant 5.000000e-01 : f32
    %233 = vector.broadcast %cst_57 : f32 to vector<2x1xf32>
    %234 = arith.mulf %233, %232 : vector<2x1xf32>
    %235 = math.tanh %234 : vector<2x1xf32>
    %cst_58 = arith.constant 5.000000e-01 : f32
    %236 = vector.broadcast %cst_58 : f32 to vector<2x1xf32>
    %237 = arith.mulf %236, %235 : vector<2x1xf32>
    %cst_59 = arith.constant 5.000000e-01 : f32
    %238 = vector.broadcast %cst_59 : f32 to vector<2x1xf32>
    %239 = arith.addf %237, %238 : vector<2x1xf32>
    %240 = vector.extract_strided_slice %17 {offsets = [0, 4, 0], sizes = [2, 1, 128], strides = [1, 1, 1]} : vector<2x8x128xf32> to vector<2x1x128xf32>
    %241 = vector.shape_cast %240 : vector<2x1x128xf32> to vector<2x128xf32>
    %242 = arith.addf %241, %210 : vector<2x128xf32>
    %243 = vector.extract_strided_slice %242 {offsets = [0, 0], sizes = [2, 96], strides = [1, 1]} : vector<2x128xf32> to vector<2x96xf32>
    %cst_60 = arith.constant 5.000000e-01 : f32
    %244 = vector.broadcast %cst_60 : f32 to vector<2x96xf32>
    %245 = arith.mulf %244, %243 : vector<2x96xf32>
    %246 = math.tanh %245 : vector<2x96xf32>
    %cst_61 = arith.constant 5.000000e-01 : f32
    %247 = vector.broadcast %cst_61 : f32 to vector<2x96xf32>
    %248 = arith.mulf %247, %246 : vector<2x96xf32>
    %cst_62 = arith.constant 5.000000e-01 : f32
    %249 = vector.broadcast %cst_62 : f32 to vector<2x96xf32>
    %250 = arith.addf %248, %249 : vector<2x96xf32>
    %251 = vector.extract_strided_slice %250 {offsets = [0, 0], sizes = [2, 32], strides = [1, 1]} : vector<2x96xf32> to vector<2x32xf32>
    %252 = vector.extract_strided_slice %250 {offsets = [0, 32], sizes = [2, 32], strides = [1, 1]} : vector<2x96xf32> to vector<2x32xf32>
    %253 = vector.extract_strided_slice %250 {offsets = [0, 64], sizes = [2, 32], strides = [1, 1]} : vector<2x96xf32> to vector<2x32xf32>
    %254 = vector.extract_strided_slice %242 {offsets = [0, 96], sizes = [2, 32], strides = [1, 1]} : vector<2x128xf32> to vector<2x32xf32>
    %255 = math.tanh %254 : vector<2x32xf32>
    %256 = arith.mulf %252, %203 : vector<2x32xf32>
    %257 = arith.mulf %251, %255 : vector<2x32xf32>
    %258 = arith.addf %256, %257 : vector<2x32xf32>
    %259 = math.tanh %258 : vector<2x32xf32>
    %260 = arith.mulf %253, %259 : vector<2x32xf32>
    %261 = tpu.concatenate %260, %228 in 1 : vector<2x32xf32>, vector<2x32xf32> -> vector<2x64xf32>
    %cst_63 = arith.constant dense<0.000000e+00> : vector<2x256xf32>
    %262 = tpu.matmul %261, %0, %cst_63 {dimension_numbers = #tpu.dot_dimension_numbers<[1], [0], [0], [1], [0, 0, 1, 1], [], []>} : vector<2x64xf32>, vector<64x256xf32>, vector<2x256xf32> -> vector<2x256xf32>
    %263 = vector.extract_strided_slice %262 {offsets = [0, 0], sizes = [2, 128], strides = [1, 1]} : vector<2x256xf32> to vector<2x128xf32>
    %264 = arith.addf %263, %3 : vector<2x128xf32>
    %265 = vector.extract_strided_slice %262 {offsets = [0, 128], sizes = [2, 128], strides = [1, 1]} : vector<2x256xf32> to vector<2x128xf32>
    %266 = vector.extract_strided_slice %264 {offsets = [0, 0], sizes = [2, 96], strides = [1, 1]} : vector<2x128xf32> to vector<2x96xf32>
    %cst_64 = arith.constant 5.000000e-01 : f32
    %267 = vector.broadcast %cst_64 : f32 to vector<2x96xf32>
    %268 = arith.mulf %267, %266 : vector<2x96xf32>
    %269 = math.tanh %268 : vector<2x96xf32>
    %cst_65 = arith.constant 5.000000e-01 : f32
    %270 = vector.broadcast %cst_65 : f32 to vector<2x96xf32>
    %271 = arith.mulf %270, %269 : vector<2x96xf32>
    %cst_66 = arith.constant 5.000000e-01 : f32
    %272 = vector.broadcast %cst_66 : f32 to vector<2x96xf32>
    %273 = arith.addf %271, %272 : vector<2x96xf32>
    %274 = vector.extract_strided_slice %273 {offsets = [0, 0], sizes = [2, 32], strides = [1, 1]} : vector<2x96xf32> to vector<2x32xf32>
    %275 = vector.extract_strided_slice %273 {offsets = [0, 32], sizes = [2, 32], strides = [1, 1]} : vector<2x96xf32> to vector<2x32xf32>
    %276 = vector.extract_strided_slice %273 {offsets = [0, 64], sizes = [2, 32], strides = [1, 1]} : vector<2x96xf32> to vector<2x32xf32>
    %277 = vector.extract_strided_slice %264 {offsets = [0, 96], sizes = [2, 32], strides = [1, 1]} : vector<2x128xf32> to vector<2x32xf32>
    %278 = math.tanh %277 : vector<2x32xf32>
    %279 = arith.mulf %275, %226 : vector<2x32xf32>
    %280 = arith.mulf %274, %278 : vector<2x32xf32>
    %281 = arith.addf %279, %280 : vector<2x32xf32>
    %282 = math.tanh %281 : vector<2x32xf32>
    %283 = arith.mulf %276, %282 : vector<2x32xf32>
    %284 = arith.mulf %283, %6 : vector<2x32xf32>
    %cst_67 = arith.constant dense<0.000000e+00> : vector<2xf32>
    %285 = vector.multi_reduction <add>, %284, %cst_67 [1] : vector<2x32xf32> to vector<2xf32>
    %286 = vector.shape_cast %285 : vector<2xf32> to vector<2x1xf32>
    %287 = arith.addf %286, %9 : vector<2x1xf32>
    %cst_68 = arith.constant 5.000000e-01 : f32
    %288 = vector.broadcast %cst_68 : f32 to vector<2x1xf32>
    %289 = arith.mulf %288, %287 : vector<2x1xf32>
    %290 = math.tanh %289 : vector<2x1xf32>
    %cst_69 = arith.constant 5.000000e-01 : f32
    %291 = vector.broadcast %cst_69 : f32 to vector<2x1xf32>
    %292 = arith.mulf %291, %290 : vector<2x1xf32>
    %cst_70 = arith.constant 5.000000e-01 : f32
    %293 = vector.broadcast %cst_70 : f32 to vector<2x1xf32>
    %294 = arith.addf %292, %293 : vector<2x1xf32>
    %295 = vector.extract_strided_slice %17 {offsets = [0, 5, 0], sizes = [2, 1, 128], strides = [1, 1, 1]} : vector<2x8x128xf32> to vector<2x1x128xf32>
    %296 = vector.shape_cast %295 : vector<2x1x128xf32> to vector<2x128xf32>
    %297 = arith.addf %296, %265 : vector<2x128xf32>
    %298 = vector.extract_strided_slice %297 {offsets = [0, 0], sizes = [2, 96], strides = [1, 1]} : vector<2x128xf32> to vector<2x96xf32>
    %cst_71 = arith.constant 5.000000e-01 : f32
    %299 = vector.broadcast %cst_71 : f32 to vector<2x96xf32>
    %300 = arith.mulf %299, %298 : vector<2x96xf32>
    %301 = math.tanh %300 : vector<2x96xf32>
    %cst_72 = arith.constant 5.000000e-01 : f32
    %302 = vector.broadcast %cst_72 : f32 to vector<2x96xf32>
    %303 = arith.mulf %302, %301 : vector<2x96xf32>
    %cst_73 = arith.constant 5.000000e-01 : f32
    %304 = vector.broadcast %cst_73 : f32 to vector<2x96xf32>
    %305 = arith.addf %303, %304 : vector<2x96xf32>
    %306 = vector.extract_strided_slice %305 {offsets = [0, 0], sizes = [2, 32], strides = [1, 1]} : vector<2x96xf32> to vector<2x32xf32>
    %307 = vector.extract_strided_slice %305 {offsets = [0, 32], sizes = [2, 32], strides = [1, 1]} : vector<2x96xf32> to vector<2x32xf32>
    %308 = vector.extract_strided_slice %305 {offsets = [0, 64], sizes = [2, 32], strides = [1, 1]} : vector<2x96xf32> to vector<2x32xf32>
    %309 = vector.extract_strided_slice %297 {offsets = [0, 96], sizes = [2, 32], strides = [1, 1]} : vector<2x128xf32> to vector<2x32xf32>
    %310 = math.tanh %309 : vector<2x32xf32>
    %311 = arith.mulf %307, %258 : vector<2x32xf32>
    %312 = arith.mulf %306, %310 : vector<2x32xf32>
    %313 = arith.addf %311, %312 : vector<2x32xf32>
    %314 = math.tanh %313 : vector<2x32xf32>
    %315 = arith.mulf %308, %314 : vector<2x32xf32>
    %316 = tpu.concatenate %315, %283 in 1 : vector<2x32xf32>, vector<2x32xf32> -> vector<2x64xf32>
    %cst_74 = arith.constant dense<0.000000e+00> : vector<2x256xf32>
    %317 = tpu.matmul %316, %0, %cst_74 {dimension_numbers = #tpu.dot_dimension_numbers<[1], [0], [0], [1], [0, 0, 1, 1], [], []>} : vector<2x64xf32>, vector<64x256xf32>, vector<2x256xf32> -> vector<2x256xf32>
    %318 = vector.extract_strided_slice %317 {offsets = [0, 0], sizes = [2, 128], strides = [1, 1]} : vector<2x256xf32> to vector<2x128xf32>
    %319 = arith.addf %318, %3 : vector<2x128xf32>
    %320 = vector.extract_strided_slice %317 {offsets = [0, 128], sizes = [2, 128], strides = [1, 1]} : vector<2x256xf32> to vector<2x128xf32>
    %321 = vector.extract_strided_slice %319 {offsets = [0, 0], sizes = [2, 96], strides = [1, 1]} : vector<2x128xf32> to vector<2x96xf32>
    %cst_75 = arith.constant 5.000000e-01 : f32
    %322 = vector.broadcast %cst_75 : f32 to vector<2x96xf32>
    %323 = arith.mulf %322, %321 : vector<2x96xf32>
    %324 = math.tanh %323 : vector<2x96xf32>
    %cst_76 = arith.constant 5.000000e-01 : f32
    %325 = vector.broadcast %cst_76 : f32 to vector<2x96xf32>
    %326 = arith.mulf %325, %324 : vector<2x96xf32>
    %cst_77 = arith.constant 5.000000e-01 : f32
    %327 = vector.broadcast %cst_77 : f32 to vector<2x96xf32>
    %328 = arith.addf %326, %327 : vector<2x96xf32>
    %329 = vector.extract_strided_slice %328 {offsets = [0, 0], sizes = [2, 32], strides = [1, 1]} : vector<2x96xf32> to vector<2x32xf32>
    %330 = vector.extract_strided_slice %328 {offsets = [0, 32], sizes = [2, 32], strides = [1, 1]} : vector<2x96xf32> to vector<2x32xf32>
    %331 = vector.extract_strided_slice %328 {offsets = [0, 64], sizes = [2, 32], strides = [1, 1]} : vector<2x96xf32> to vector<2x32xf32>
    %332 = vector.extract_strided_slice %319 {offsets = [0, 96], sizes = [2, 32], strides = [1, 1]} : vector<2x128xf32> to vector<2x32xf32>
    %333 = math.tanh %332 : vector<2x32xf32>
    %334 = arith.mulf %330, %281 : vector<2x32xf32>
    %335 = arith.mulf %329, %333 : vector<2x32xf32>
    %336 = arith.addf %334, %335 : vector<2x32xf32>
    %337 = math.tanh %336 : vector<2x32xf32>
    %338 = arith.mulf %331, %337 : vector<2x32xf32>
    %339 = arith.mulf %338, %6 : vector<2x32xf32>
    %cst_78 = arith.constant dense<0.000000e+00> : vector<2xf32>
    %340 = vector.multi_reduction <add>, %339, %cst_78 [1] : vector<2x32xf32> to vector<2xf32>
    %341 = vector.shape_cast %340 : vector<2xf32> to vector<2x1xf32>
    %342 = arith.addf %341, %9 : vector<2x1xf32>
    %cst_79 = arith.constant 5.000000e-01 : f32
    %343 = vector.broadcast %cst_79 : f32 to vector<2x1xf32>
    %344 = arith.mulf %343, %342 : vector<2x1xf32>
    %345 = math.tanh %344 : vector<2x1xf32>
    %cst_80 = arith.constant 5.000000e-01 : f32
    %346 = vector.broadcast %cst_80 : f32 to vector<2x1xf32>
    %347 = arith.mulf %346, %345 : vector<2x1xf32>
    %cst_81 = arith.constant 5.000000e-01 : f32
    %348 = vector.broadcast %cst_81 : f32 to vector<2x1xf32>
    %349 = arith.addf %347, %348 : vector<2x1xf32>
    %350 = vector.extract_strided_slice %17 {offsets = [0, 6, 0], sizes = [2, 1, 128], strides = [1, 1, 1]} : vector<2x8x128xf32> to vector<2x1x128xf32>
    %351 = vector.shape_cast %350 : vector<2x1x128xf32> to vector<2x128xf32>
    %352 = arith.addf %351, %320 : vector<2x128xf32>
    %353 = vector.extract_strided_slice %352 {offsets = [0, 0], sizes = [2, 96], strides = [1, 1]} : vector<2x128xf32> to vector<2x96xf32>
    %cst_82 = arith.constant 5.000000e-01 : f32
    %354 = vector.broadcast %cst_82 : f32 to vector<2x96xf32>
    %355 = arith.mulf %354, %353 : vector<2x96xf32>
    %356 = math.tanh %355 : vector<2x96xf32>
    %cst_83 = arith.constant 5.000000e-01 : f32
    %357 = vector.broadcast %cst_83 : f32 to vector<2x96xf32>
    %358 = arith.mulf %357, %356 : vector<2x96xf32>
    %cst_84 = arith.constant 5.000000e-01 : f32
    %359 = vector.broadcast %cst_84 : f32 to vector<2x96xf32>
    %360 = arith.addf %358, %359 : vector<2x96xf32>
    %361 = vector.extract_strided_slice %360 {offsets = [0, 0], sizes = [2, 32], strides = [1, 1]} : vector<2x96xf32> to vector<2x32xf32>
    %362 = vector.extract_strided_slice %360 {offsets = [0, 32], sizes = [2, 32], strides = [1, 1]} : vector<2x96xf32> to vector<2x32xf32>
    %363 = vector.extract_strided_slice %360 {offsets = [0, 64], sizes = [2, 32], strides = [1, 1]} : vector<2x96xf32> to vector<2x32xf32>
    %364 = vector.extract_strided_slice %352 {offsets = [0, 96], sizes = [2, 32], strides = [1, 1]} : vector<2x128xf32> to vector<2x32xf32>
    %365 = math.tanh %364 : vector<2x32xf32>
    %366 = arith.mulf %362, %313 : vector<2x32xf32>
    %367 = arith.mulf %361, %365 : vector<2x32xf32>
    %368 = arith.addf %366, %367 : vector<2x32xf32>
    %369 = math.tanh %368 : vector<2x32xf32>
    %370 = arith.mulf %363, %369 : vector<2x32xf32>
    %371 = tpu.concatenate %370, %338 in 1 : vector<2x32xf32>, vector<2x32xf32> -> vector<2x64xf32>
    %cst_85 = arith.constant dense<0.000000e+00> : vector<2x256xf32>
    %372 = tpu.matmul %371, %0, %cst_85 {dimension_numbers = #tpu.dot_dimension_numbers<[1], [0], [0], [1], [0, 0, 1, 1], [], []>} : vector<2x64xf32>, vector<64x256xf32>, vector<2x256xf32> -> vector<2x256xf32>
    %373 = vector.extract_strided_slice %372 {offsets = [0, 0], sizes = [2, 128], strides = [1, 1]} : vector<2x256xf32> to vector<2x128xf32>
    %374 = arith.addf %373, %3 : vector<2x128xf32>
    %375 = vector.extract_strided_slice %372 {offsets = [0, 128], sizes = [2, 128], strides = [1, 1]} : vector<2x256xf32> to vector<2x128xf32>
    %376 = vector.extract_strided_slice %374 {offsets = [0, 0], sizes = [2, 96], strides = [1, 1]} : vector<2x128xf32> to vector<2x96xf32>
    %cst_86 = arith.constant 5.000000e-01 : f32
    %377 = vector.broadcast %cst_86 : f32 to vector<2x96xf32>
    %378 = arith.mulf %377, %376 : vector<2x96xf32>
    %379 = math.tanh %378 : vector<2x96xf32>
    %cst_87 = arith.constant 5.000000e-01 : f32
    %380 = vector.broadcast %cst_87 : f32 to vector<2x96xf32>
    %381 = arith.mulf %380, %379 : vector<2x96xf32>
    %cst_88 = arith.constant 5.000000e-01 : f32
    %382 = vector.broadcast %cst_88 : f32 to vector<2x96xf32>
    %383 = arith.addf %381, %382 : vector<2x96xf32>
    %384 = vector.extract_strided_slice %383 {offsets = [0, 0], sizes = [2, 32], strides = [1, 1]} : vector<2x96xf32> to vector<2x32xf32>
    %385 = vector.extract_strided_slice %383 {offsets = [0, 32], sizes = [2, 32], strides = [1, 1]} : vector<2x96xf32> to vector<2x32xf32>
    %386 = vector.extract_strided_slice %383 {offsets = [0, 64], sizes = [2, 32], strides = [1, 1]} : vector<2x96xf32> to vector<2x32xf32>
    %387 = vector.extract_strided_slice %374 {offsets = [0, 96], sizes = [2, 32], strides = [1, 1]} : vector<2x128xf32> to vector<2x32xf32>
    %388 = math.tanh %387 : vector<2x32xf32>
    %389 = arith.mulf %385, %336 : vector<2x32xf32>
    %390 = arith.mulf %384, %388 : vector<2x32xf32>
    %391 = arith.addf %389, %390 : vector<2x32xf32>
    %392 = math.tanh %391 : vector<2x32xf32>
    %393 = arith.mulf %386, %392 : vector<2x32xf32>
    %394 = arith.mulf %393, %6 : vector<2x32xf32>
    %cst_89 = arith.constant dense<0.000000e+00> : vector<2xf32>
    %395 = vector.multi_reduction <add>, %394, %cst_89 [1] : vector<2x32xf32> to vector<2xf32>
    %396 = vector.shape_cast %395 : vector<2xf32> to vector<2x1xf32>
    %397 = arith.addf %396, %9 : vector<2x1xf32>
    %cst_90 = arith.constant 5.000000e-01 : f32
    %398 = vector.broadcast %cst_90 : f32 to vector<2x1xf32>
    %399 = arith.mulf %398, %397 : vector<2x1xf32>
    %400 = math.tanh %399 : vector<2x1xf32>
    %cst_91 = arith.constant 5.000000e-01 : f32
    %401 = vector.broadcast %cst_91 : f32 to vector<2x1xf32>
    %402 = arith.mulf %401, %400 : vector<2x1xf32>
    %cst_92 = arith.constant 5.000000e-01 : f32
    %403 = vector.broadcast %cst_92 : f32 to vector<2x1xf32>
    %404 = arith.addf %402, %403 : vector<2x1xf32>
    %405 = vector.extract_strided_slice %17 {offsets = [0, 7, 0], sizes = [2, 1, 128], strides = [1, 1, 1]} : vector<2x8x128xf32> to vector<2x1x128xf32>
    %406 = vector.shape_cast %405 : vector<2x1x128xf32> to vector<2x128xf32>
    %407 = arith.addf %406, %375 : vector<2x128xf32>
    %408 = vector.extract_strided_slice %407 {offsets = [0, 0], sizes = [2, 96], strides = [1, 1]} : vector<2x128xf32> to vector<2x96xf32>
    %cst_93 = arith.constant 5.000000e-01 : f32
    %409 = vector.broadcast %cst_93 : f32 to vector<2x96xf32>
    %410 = arith.mulf %409, %408 : vector<2x96xf32>
    %411 = math.tanh %410 : vector<2x96xf32>
    %cst_94 = arith.constant 5.000000e-01 : f32
    %412 = vector.broadcast %cst_94 : f32 to vector<2x96xf32>
    %413 = arith.mulf %412, %411 : vector<2x96xf32>
    %cst_95 = arith.constant 5.000000e-01 : f32
    %414 = vector.broadcast %cst_95 : f32 to vector<2x96xf32>
    %415 = arith.addf %413, %414 : vector<2x96xf32>
    %416 = vector.extract_strided_slice %415 {offsets = [0, 0], sizes = [2, 32], strides = [1, 1]} : vector<2x96xf32> to vector<2x32xf32>
    %417 = vector.extract_strided_slice %415 {offsets = [0, 32], sizes = [2, 32], strides = [1, 1]} : vector<2x96xf32> to vector<2x32xf32>
    %418 = vector.extract_strided_slice %415 {offsets = [0, 64], sizes = [2, 32], strides = [1, 1]} : vector<2x96xf32> to vector<2x32xf32>
    %419 = vector.extract_strided_slice %407 {offsets = [0, 96], sizes = [2, 32], strides = [1, 1]} : vector<2x128xf32> to vector<2x32xf32>
    %420 = math.tanh %419 : vector<2x32xf32>
    %421 = arith.mulf %417, %368 : vector<2x32xf32>
    %422 = arith.mulf %416, %420 : vector<2x32xf32>
    %423 = arith.addf %421, %422 : vector<2x32xf32>
    %424 = math.tanh %423 : vector<2x32xf32>
    %425 = arith.mulf %418, %424 : vector<2x32xf32>
    %426 = tpu.concatenate %425, %393 in 1 : vector<2x32xf32>, vector<2x32xf32> -> vector<2x64xf32>
    %cst_96 = arith.constant dense<0.000000e+00> : vector<2x256xf32>
    %427 = tpu.matmul %426, %0, %cst_96 {dimension_numbers = #tpu.dot_dimension_numbers<[1], [0], [0], [1], [0, 0, 1, 1], [], []>} : vector<2x64xf32>, vector<64x256xf32>, vector<2x256xf32> -> vector<2x256xf32>
    %428 = vector.extract_strided_slice %427 {offsets = [0, 0], sizes = [2, 128], strides = [1, 1]} : vector<2x256xf32> to vector<2x128xf32>
    %429 = arith.addf %428, %3 : vector<2x128xf32>
    %430 = vector.extract_strided_slice %429 {offsets = [0, 0], sizes = [2, 96], strides = [1, 1]} : vector<2x128xf32> to vector<2x96xf32>
    %cst_97 = arith.constant 5.000000e-01 : f32
    %431 = vector.broadcast %cst_97 : f32 to vector<2x96xf32>
    %432 = arith.mulf %431, %430 : vector<2x96xf32>
    %433 = math.tanh %432 : vector<2x96xf32>
    %cst_98 = arith.constant 5.000000e-01 : f32
    %434 = vector.broadcast %cst_98 : f32 to vector<2x96xf32>
    %435 = arith.mulf %434, %433 : vector<2x96xf32>
    %cst_99 = arith.constant 5.000000e-01 : f32
    %436 = vector.broadcast %cst_99 : f32 to vector<2x96xf32>
    %437 = arith.addf %435, %436 : vector<2x96xf32>
    %438 = vector.extract_strided_slice %437 {offsets = [0, 0], sizes = [2, 32], strides = [1, 1]} : vector<2x96xf32> to vector<2x32xf32>
    %439 = vector.extract_strided_slice %437 {offsets = [0, 32], sizes = [2, 32], strides = [1, 1]} : vector<2x96xf32> to vector<2x32xf32>
    %440 = vector.extract_strided_slice %437 {offsets = [0, 64], sizes = [2, 32], strides = [1, 1]} : vector<2x96xf32> to vector<2x32xf32>
    %441 = vector.extract_strided_slice %429 {offsets = [0, 96], sizes = [2, 32], strides = [1, 1]} : vector<2x128xf32> to vector<2x32xf32>
    %442 = math.tanh %441 : vector<2x32xf32>
    %443 = arith.mulf %439, %391 : vector<2x32xf32>
    %444 = arith.mulf %438, %442 : vector<2x32xf32>
    %445 = arith.addf %443, %444 : vector<2x32xf32>
    %446 = math.tanh %445 : vector<2x32xf32>
    %447 = arith.mulf %440, %446 : vector<2x32xf32>
    %448 = arith.mulf %447, %6 : vector<2x32xf32>
    %cst_100 = arith.constant dense<0.000000e+00> : vector<2xf32>
    %449 = vector.multi_reduction <add>, %448, %cst_100 [1] : vector<2x32xf32> to vector<2xf32>
    %450 = vector.shape_cast %449 : vector<2xf32> to vector<2x1xf32>
    %451 = arith.addf %450, %9 : vector<2x1xf32>
    %cst_101 = arith.constant 5.000000e-01 : f32
    %452 = vector.broadcast %cst_101 : f32 to vector<2x1xf32>
    %453 = arith.mulf %452, %451 : vector<2x1xf32>
    %454 = math.tanh %453 : vector<2x1xf32>
    %cst_102 = arith.constant 5.000000e-01 : f32
    %455 = vector.broadcast %cst_102 : f32 to vector<2x1xf32>
    %456 = arith.mulf %455, %454 : vector<2x1xf32>
    %cst_103 = arith.constant 5.000000e-01 : f32
    %457 = vector.broadcast %cst_103 : f32 to vector<2x1xf32>
    %458 = arith.addf %456, %457 : vector<2x1xf32>
    %459 = tpu.concatenate %74, %129, %184, %239, %294, %349, %404, %458 in 1 : vector<2x1xf32>, vector<2x1xf32>, vector<2x1xf32>, vector<2x1xf32>, vector<2x1xf32>, vector<2x1xf32>, vector<2x1xf32>, vector<2x1xf32> -> vector<2x8xf32>
    %c0_104 = arith.constant 0 : index
    %c0_105 = arith.constant 0 : index
    %460 = vector.load %arg7[%c0_104, %c0_105] : memref<2x8xf32, #tpu.memory_space<vmem>>, vector<2x8xf32>
    tpu.vector_store %arg7[%c0_104, %c0_105], %459 {strides = array<i32>} : memref<2x8xf32, #tpu.memory_space<vmem>>, vector<2x8xf32>,
    return
  }
}

</mosaic_0001>

<llo_original>
// kernel: discriminator_forward.1
$region0: #{discriminator_forward.1}
  #allocation0 [shape = 'u32[]', space=smem, size = 0x4, offset = 0x4, fixed_abs, tag = 'smem constant byte address 0x4 - core index']
  #allocation1 [shape = 'u32[144,128]{1,0:T(1,128)}', space=vmem, size = 0x12000, scoped, tag = 'internal scratch']
  #allocation2 [shape = 'f32[1,1]{1,0:T(1,128)S(1)}', space=vmem, size = 0x200, scoped, tag = 'scoped memory for discriminator_forward.1']
  %s0 = inlined_call_operand.vmem [shape: f32[2,8,8], index: 0, kind: input, shape index: {}]
  %s1 = inlined_call_operand.vmem [shape: f32[8,128], index: 1, kind: input, shape index: {}]
  %s2 = inlined_call_operand.vmem [shape: f32[1,128], index: 2, kind: input, shape index: {}]
  %s3 = inlined_call_operand.hbm [shape: f32[64,256], index: 3, kind: input, shape index: {}]
  %s4 = inlined_call_operand.vmem [shape: f32[1,128], index: 4, kind: input, shape index: {}]
  %s5 = inlined_call_operand.vmem [shape: f32[1,32], index: 5, kind: input, shape index: {}]
  %s6 = inlined_call_operand.<no memory space> [shape: f32[1,1], index: 6, kind: input, shape index: {}]
  %s7 = inlined_call_operand.hbm [shape: f32[2,8], index: 7, kind: output, shape index: {}]
  %s8 = sld [smem:[#allocation0]]
  $region42: #{discriminator_forward.1} parent=0
    _
  %s10 = ssub.s32 1, %s8
  %s11 = scalar_select 0, %s10, %s8
  %v12 = vstv %s6
  %13 = vst [vmem:[#allocation2] sm:$0x1] %v12
  $region1: #{discriminator_forward.1} parent=0
    #allocation3 [shape = 'u8[65536]{0}', space=vmem, size = 0x10000, scoped, tag = 'input window, operand 3, single buffered']
    #allocation4 [shape = 's32[1]{0}', space=sflag, size = 0x4, scoped, tag = 'scoped memory for discriminator_forward.1']
    #allocation5 [shape = 's32[1]{0}', space=sflag, size = 0x4, scoped, tag = 'scoped memory for discriminator_forward.1']
    #allocation6 [shape = 'u8[1024]{0}', space=vmem, size = 0x400, scoped, tag = 'output window, operand 0, single buffered']
    %14 = vsyncpa [#allocation4], 0
    %15 = vsyncpa [#allocation5], 0
    // Predicated region
    $region2: #{discriminator_forward.1} parent=1 // pred_check
      _
    $region3: #{discriminator_forward.1} parent=1 // pred_check_branch
      %17 = sbr.rel (0) target = $region5
    $region4: #{discriminator_forward.1} parent=1 // pred_region
      _
    $region5: #{discriminator_forward.1} parent=1 // pred_fallthru
      _
    // Predicated region
    $region6: #{discriminator_forward.1} parent=1 // pred_check
      _
    $region7: #{discriminator_forward.1} parent=1 // pred_check_branch
      %19 = sbr.rel (0) target = $region9
    $region8: #{discriminator_forward.1} parent=1 // pred_region
      _
    $region9: #{discriminator_forward.1} parent=1 // pred_fallthru
      _
    // Predicated region
    $region10: #{discriminator_forward.1} parent=1 // pred_check
      _
    $region11: #{discriminator_forward.1} parent=1 // pred_check_branch
      %21 = sbr.rel (0) target = $region13
    $region12: #{discriminator_forward.1} parent=1 // pred_region
      _
    $region13: #{discriminator_forward.1} parent=1 // pred_fallthru
      _
    // Predicated region
    $region14: #{discriminator_forward.1} parent=1 // pred_check
      _
    $region15: #{discriminator_forward.1} parent=1 // pred_check_branch
      %23 = sbr.rel (0) target = $region17
    $region16: #{discriminator_forward.1} parent=1 // pred_region
      %s25 = ssub.s32 2048, 2048
      %26 = vsyncadd [#allocation4], %s25
      %s27 = sshll.u32 [#allocation3], 4
      %s28 = int_to_ptr.vmem [resolvable:$true] %s27
      %33 = dma.hbm_to_vmem [thread:$0]  %s3, 2048, %s28, [#allocation4], 256, 256, 16
    $region17: #{discriminator_forward.1} parent=1 // pred_fallthru
      _
    // Predicated region
    $region18: #{discriminator_forward.1} parent=1 // pred_check
      _
    $region19: #{discriminator_forward.1} parent=1 // pred_check_branch
      %35 = sbr.rel (0) target = $region21
    $region20: #{discriminator_forward.1} parent=1 // pred_region
      _
    $region21: #{discriminator_forward.1} parent=1 // pred_fallthru
      _
    // Predicated region
    $region22: #{discriminator_forward.1} parent=1 // pred_check
      _
    $region23: #{discriminator_forward.1} parent=1 // pred_check_branch
      %37 = sbr.rel (0) target = $region25
    $region24: #{discriminator_forward.1} parent=1 // pred_region
      _
    $region25: #{discriminator_forward.1} parent=1 // pred_fallthru
      _
    // Predicated region
    $region26: #{discriminator_forward.1} parent=1 // pred_check
      _
    $region27: #{discriminator_forward.1} parent=1 // pred_check_branch
      %39 = sbr.rel (0) target = $region29
    $region28: #{discriminator_forward.1} parent=1 // pred_region
      _
    $region29: #{discriminator_forward.1} parent=1 // pred_fallthru
      _
    // Predicated region
    $region30: #{discriminator_forward.1} parent=1 // pred_check
      _
    $region31: #{discriminator_forward.1} parent=1 // pred_check_branch
      %41 = sbr.rel (0) target = $region33
    $region32: #{discriminator_forward.1} parent=1 // pred_region
      %42 = dma.done [#allocation4], 2048
    $region33: #{discriminator_forward.1} parent=1 // pred_fallthru
      _
    %v43 = vld [vmem:[#allocation3] sm:$0xff]
    %v44 = vld [vmem:[#allocation3 + $0x8] sm:$0xff]
    %v45 = vld [vmem:[#allocation3 + $0x10] sm:$0xff]
    %v46 = vld [vmem:[#allocation3 + $0x18] sm:$0xff]
    %v47 = vld [vmem:[#allocation3 + $0x20] sm:$0xff]
    %v48 = vld [vmem:[#allocation3 + $0x28] sm:$0xff]
    %v49 = vld [vmem:[#allocation3 + $0x30] sm:$0xff]
    %v50 = vld [vmem:[#allocation3 + $0x38] sm:$0xff]
    %v51 = vld [vmem:[#allocation3 + $0x40] sm:$0xff]
    %v52 = vld [vmem:[#allocation3 + $0x48] sm:$0xff]
    %v53 = vld [vmem:[#allocation3 + $0x50] sm:$0xff]
    %v54 = vld [vmem:[#allocation3 + $0x58] sm:$0xff]
    %v55 = vld [vmem:[#allocation3 + $0x60] sm:$0xff]
    %v56 = vld [vmem:[#allocation3 + $0x68] sm:$0xff]
    %v57 = vld [vmem:[#allocation3 + $0x70] sm:$0xff]
    %v58 = vld [vmem:[#allocation3 + $0x78] sm:$0xff]
    %v59 = vld [vmem:[%s4] sm:$0x1]
    %v61 = vlaneseq
    %v62 = vshrl.u32 %v61, 7
    %v63 = vsub.s32 0, %v62
    %v64 = vrot.slane %v59, %v63
    %v66 = vld [vmem:[%s5] sm:$0x1]
    %v68 = vlaneseq
    %v69 = vshrl.u32 %v68, 7
    %v70 = vsub.s32 0, %v69
    %v71 = vrot.slane %v66, %v70
    %v72 = vld [vmem:[#allocation2] sm:$0x1]
    %v74 = vlaneseq
    %v75 = vshrl.u32 %v74, 7
    %v76 = vsub.s32 0, %v75
    %v77 = vrot.slane %v72, %v76
    %v79 = vld [vmem:[%s0] sm:$0xff]
    %v80 = vld [vmem:[%s0 + $0x8] sm:$0xff]
    %v81 = vld [vmem:[%s1] sm:$0xff]
    %v82 = vld [vmem:[%s2] sm:$0x1]
    %v84 = vlaneseq
    %v85 = vshrl.u32 %v84, 7
    %v86 = vsub.s32 0, %v85
    %v87 = vrot.slane %v82, %v86
    %vm89 = vcmask 64512
    %v91 = vsel %vm89, %v79, 0
    %v94 = vsel %vm89, %v80, 0
    %96 = vmatprep.subr.mxu0 0.0
    %97 = vmatpush1.msra.mxu0 %v81
    %98 = vmatprep.subr.mxu0 0.0
    %99 = vmatpush1.msra.mxu0 0.0
    %100 = vmatprep.subr.mxu0 0.0
    %101 = vmatpush1.msra.mxu0 0.0
    %102 = vmatprep.subr.mxu0 0.0
    %103 = vmatpush1.msra.mxu0 0.0
    %104 = vmatprep.subr.mxu0 0.0
    %105 = vmatpush1.msra.mxu0 0.0
    %106 = vmatprep.subr.mxu0 0.0
    %107 = vmatpush1.msra.mxu0 0.0
    %108 = vmatprep.subr.mxu0 0.0
    %109 = vmatpush1.msra.mxu0 0.0
    %110 = vmatprep.subr.mxu0 0.0
    %111 = vmatpush1.msra.mxu0 0.0
    %112 = vmatprep.subr.mxu0 0.0
    %113 = vmatpush1.msra.mxu0 0.0
    %114 = vmatprep.subr.mxu0 0.0
    %115 = vmatpush1.msra.mxu0 0.0
    %116 = vmatprep.subr.mxu0 0.0
    %117 = vmatpush1.msra.mxu0 0.0
    %118 = vmatprep.subr.mxu0 0.0
    %119 = vmatpush1.msra.mxu0 0.0
    %120 = vmatprep.subr.mxu0 0.0
    %121 = vmatpush1.msra.mxu0 0.0
    %122 = vmatprep.subr.mxu0 0.0
    %123 = vmatpush1.msra.mxu0 0.0
    %124 = vmatprep.subr.mxu0 0.0
    %125 = vmatpush1.msra.mxu0 0.0
    %126 = vmatprep.subr.mxu0 0.0
    %127 = vmatpush1.msra.mxu0 0.0
    %128 = vmatprep.subr.mxu0 0.0
    %129 = vmatpush1.msra.mxu0 0.0
    %130 = vmatprep.subr.mxu0 0.0
    %131 = vmatpush1.msra.mxu0 0.0
    %132 = vmatprep.subr.mxu0 0.0
    %133 = vmatpush1.msra.mxu0 0.0
    %134 = vmatprep.subr.mxu0 0.0
    %135 = vmatpush1.msra.mxu0 0.0
    %136 = vmatprep.subr.mxu0 0.0
    %137 = vmatpush1.msra.mxu0 0.0
    %138 = vmatprep.subr.mxu0 0.0
    %139 = vmatpush1.msra.mxu0 0.0
    %140 = vmatprep.subr.mxu0 0.0
    %141 = vmatpush1.msra.mxu0 0.0
    %142 = vmatprep.subr.mxu0 0.0
    %143 = vmatpush1.msra.mxu0 0.0
    %144 = vmatprep.subr.mxu0 0.0
    %145 = vmatpush1.msra.mxu0 0.0
    %146 = vmatprep.subr.mxu0 0.0
    %147 = vmatpush1.msra.mxu0 0.0
    %148 = vmatprep.subr.mxu0 0.0
    %149 = vmatpush1.msra.mxu0 0.0
    %150 = vmatprep.subr.mxu0 0.0
    %151 = vmatpush1.msra.mxu0 0.0
    %152 = vmatprep.subr.mxu0 0.0
    %153 = vmatpush1.msra.mxu0 0.0
    %154 = vmatprep.subr.mxu0 0.0
    %155 = vmatpush1.msra.mxu0 0.0
    %156 = vmatprep.subr.mxu0 0.0
    %157 = vmatpush1.msra.mxu0 0.0
    %158 = vmatprep.subr.mxu0 0.0
    %159 = vmatpush1.msra.mxu0 0.0
    %160 = vmatprep.mubr.f32.mxu0 0.0
    %161 = vmatmul.mubr.f32.gmra.mrb[0].mxu0 %v91
    %v162 = vpop.f32.mrb[0].mxu0
    %v163 = vadd.f32 %v87, %v162
    %v164 = vpop.f32.mrb[0].mxu0
    %165 = vmatprep.mubr.f32.mxu0 0.0
    %166 = vmatmul.mubr.f32.gmra.mrb[0].mxu0 %v94
    %v167 = vpop.f32.mrb[0].mxu0
    %v168 = vadd.f32 %v87, %v167
    %v169 = vpop.f32.mrb[0].mxu0
    %170 = vdwg.mxu0
    %v171 = vadd.f32 %v163, 0.0
    %v172 = vadd.f32 %v168, 0.0
    %v173 = vmul.f32 %v171, 0.5
    %v174 = vmul.f32 %v172, 0.5
    %v175 = vtanh.pop %v173
    %v176 = vtanh.pop %v174
    %v177 = vmul.f32 %v175, 0.5
    %v178 = vmul.f32 %v176, 0.5
    %v179 = vadd.f32 %v177, 0.5
    %v180 = vadd.f32 %v178, 0.5
    %v181 = vtanh.pop %v171
    %v182 = vtanh.pop %v172
    %v183 = vmul.f32 %v179, 0.0
    %v184 = vmul.f32 %v180, 0.0
    %187 = vrot.lane.b32.xlu0 %v181, 32
    %v188 = vpop.permute.xlu0 %187
    %189 = vrot.lane.b32.xlu0 %v182, 32
    %v190 = vpop.permute.xlu0 %189
    %v193 = vmul.f32 %v179, %v188
    %v194 = vmul.f32 %v180, %v190
    %197 = vrot.lane.b32.xlu0 %v193, 32
    %v198 = vpop.permute.xlu0 %197
    %199 = vrot.lane.b32.xlu0 %v194, 32
    %v200 = vpop.permute.xlu0 %199
    %v203 = vadd.f32 %v183, %v198
    %v204 = vadd.f32 %v184, %v200
    %v205 = vtanh.pop %v203
    %v206 = vtanh.pop %v204
    %209 = vrot.lane.b32.xlu0 %v205, 32
    %v210 = vpop.permute.xlu0 %209
    %211 = vrot.lane.b32.xlu0 %v206, 32
    %v212 = vpop.permute.xlu0 %211
    %v215 = vmul.f32 %v179, %v210
    %v216 = vmul.f32 %v180, %v212
    %v219 = vrot.slane %v216, 7
    %vm220 = vcmask 1041409
    %v221 = vsel %vm220, %v219, %v215
    %222 = vrot.lane.b32.xlu0 %v221, 64
    %v223 = vpop.permute.xlu0 %222
    %vm225 = vcmask 261120
    %v226 = vsel %vm225, %v223, 0.0
    %vm227 = vcmask 523264
    %v229 = vsel %vm227, %v226, 0
    %231 = vmatprep.subr.mxu0 %v44
    %232 = vmatpush1.msra.mxu0 %v43
    %233 = vmatprep.subr.mxu0 %v46
    %234 = vmatpush1.msra.mxu0 %v45
    %235 = vmatprep.subr.mxu0 %v48
    %236 = vmatpush1.msra.mxu0 %v47
    %237 = vmatprep.subr.mxu0 %v50
    %238 = vmatpush1.msra.mxu0 %v49
    %239 = vmatprep.subr.mxu0 %v52
    %240 = vmatpush1.msra.mxu0 %v51
    %241 = vmatprep.subr.mxu0 %v54
    %242 = vmatpush1.msra.mxu0 %v53
    %243 = vmatprep.subr.mxu0 %v56
    %244 = vmatpush1.msra.mxu0 %v55
    %245 = vmatprep.subr.mxu0 %v58
    %246 = vmatpush1.msra.mxu0 %v57
    %247 = vmatprep.subr.mxu0 0.0
    %248 = vmatpush1.msra.mxu0 0.0
    %249 = vmatprep.subr.mxu0 0.0
    %250 = vmatpush1.msra.mxu0 0.0
    %251 = vmatprep.subr.mxu0 0.0
    %252 = vmatpush1.msra.mxu0 0.0
    %253 = vmatprep.subr.mxu0 0.0
    %254 = vmatpush1.msra.mxu0 0.0
    %255 = vmatprep.subr.mxu0 0.0
    %256 = vmatpush1.msra.mxu0 0.0
    %257 = vmatprep.subr.mxu0 0.0
    %258 = vmatpush1.msra.mxu0 0.0
    %259 = vmatprep.subr.mxu0 0.0
    %260 = vmatpush1.msra.mxu0 0.0
    %261 = vmatprep.subr.mxu0 0.0
    %262 = vmatpush1.msra.mxu0 0.0
    %263 = vmatprep.subr.mxu0 0.0
    %264 = vmatpush1.msra.mxu0 0.0
    %265 = vmatprep.subr.mxu0 0.0
    %266 = vmatpush1.msra.mxu0 0.0
    %267 = vmatprep.subr.mxu0 0.0
    %268 = vmatpush1.msra.mxu0 0.0
    %269 = vmatprep.subr.mxu0 0.0
    %270 = vmatpush1.msra.mxu0 0.0
    %271 = vmatprep.subr.mxu0 0.0
    %272 = vmatpush1.msra.mxu0 0.0
    %273 = vmatprep.subr.mxu0 0.0
    %274 = vmatpush1.msra.mxu0 0.0
    %275 = vmatprep.subr.mxu0 0.0
    %276 = vmatpush1.msra.mxu0 0.0
    %277 = vmatprep.subr.mxu0 0.0
    %278 = vmatpush1.msra.mxu0 0.0
    %279 = vmatprep.subr.mxu0 0.0
    %280 = vmatpush1.msra.mxu0 0.0
    %281 = vmatprep.subr.mxu0 0.0
    %282 = vmatpush1.msra.mxu0 0.0
    %283 = vmatprep.subr.mxu0 0.0
    %284 = vmatpush1.msra.mxu0 0.0
    %285 = vmatprep.subr.mxu0 0.0
    %286 = vmatpush1.msra.mxu0 0.0
    %287 = vmatprep.subr.mxu0 0.0
    %288 = vmatpush1.msra.mxu0 0.0
    %289 = vmatprep.subr.mxu0 0.0
    %290 = vmatpush1.msra.mxu0 0.0
    %291 = vmatprep.subr.mxu0 0.0
    %292 = vmatpush1.msra.mxu0 0.0
    %293 = vmatprep.subr.mxu0 0.0
    %294 = vmatpush1.msra.mxu0 0.0
    %295 = vmatprep.mubr.f32.mxu0 0.0
    %296 = vmatmul.mubr.f32.gmra.mrb[0].mxu0 %v229
    %v297 = vpop.f32.mrb[0].mxu0
    %v298 = vadd.f32 0.0, %v297
    %v299 = vpop.f32.mrb[0].mxu0
    %v300 = vadd.f32 0.0, %v299
    %301 = vdwg.mxu0
    %v302 = vadd.f32 %v298, %v64
    %v303 = vmul.f32 %v302, 0.5
    %v304 = vtanh.pop %v303
    %v305 = vmul.f32 %v304, 0.5
    %v306 = vadd.f32 %v305, 0.5
    %v307 = vtanh.pop %v302
    %v308 = vmul.f32 %v306, 0.0
    %310 = vrot.lane.b32.xlu0 %v307, 32
    %v311 = vpop.permute.xlu0 %310
    %v313 = vmul.f32 %v306, %v311
    %315 = vrot.lane.b32.xlu0 %v313, 32
    %v316 = vpop.permute.xlu0 %315
    %v318 = vadd.f32 %v308, %v316
    %v319 = vtanh.pop %v318
    %321 = vrot.lane.b32.xlu0 %v319, 32
    %v322 = vpop.permute.xlu0 %321
    %v324 = vmul.f32 %v306, %v322
    %325 = vrot.lane.b32.xlu0 %v71, 64
    %v326 = vpop.permute.xlu0 %325
    %v328 = vmul.f32 %v324, %v326
    %330 = vrot.lane.b32.xlu0 %v328, 64
    %v331 = vpop.permute.xlu0 %330
    %vm333 = vcmask 254976
    %v334 = vsel %vm333, %v331, 0.0
    %335 = vadd.xlane.f32.xlu0 %v334
    %v336 = vpop.xlane.xlu0 %335
    %v337 = vadd.f32 %v336, %v77
    %v338 = vmul.f32 %v337, 0.5
    %v339 = vtanh.pop %v338
    %v340 = vmul.f32 %v339, 0.5
    %v341 = vadd.f32 %v340, 0.5
    %v343 = vrot.slane %v300, 7
    %v346 = vadd.f32 %v163, %v343
    %v347 = vadd.f32 %v168, %v300
    %v348 = vmul.f32 %v346, 0.5
    %v349 = vmul.f32 %v347, 0.5
    %v350 = vtanh.pop %v348
    %v351 = vtanh.pop %v349
    %v352 = vmul.f32 %v350, 0.5
    %v353 = vmul.f32 %v351, 0.5
    %v354 = vadd.f32 %v352, 0.5
    %v355 = vadd.f32 %v353, 0.5
    %v356 = vtanh.pop %v346
    %v357 = vtanh.pop %v347
    %v360 = vrot.slane %v203, 7
    %v361 = vrot.slane %v204, 7
    %v364 = vmul.f32 %v354, %v360
    %v365 = vmul.f32 %v355, %v361
    %368 = vrot.lane.b32.xlu0 %v356, 32
    %v369 = vpop.permute.xlu0 %368
    %370 = vrot.lane.b32.xlu0 %v357, 32
    %v371 = vpop.permute.xlu0 %370
    %v374 = vmul.f32 %v354, %v369
    %v375 = vmul.f32 %v355, %v371
    %378 = vrot.lane.b32.xlu0 %v374, 32
    %v379 = vpop.permute.xlu0 %378
    %380 = vrot.lane.b32.xlu0 %v375, 32
    %v381 = vpop.permute.xlu0 %380
    %v384 = vadd.f32 %v364, %v379
    %v385 = vadd.f32 %v365, %v381
    %v386 = vtanh.pop %v384
    %v387 = vtanh.pop %v385
    %390 = vrot.lane.b32.xlu0 %v386, 32
    %v391 = vpop.permute.xlu0 %390
    %392 = vrot.lane.b32.xlu0 %v387, 32
    %v393 = vpop.permute.xlu0 %392
    %v396 = vmul.f32 %v354, %v391
    %v397 = vmul.f32 %v355, %v393
    %v400 = vrot.slane %v397, 7
    %vm401 = vcmask 1042434
    %v402 = vsel %vm401, %v400, %v396
    %403 = vrot.lane.b32.xlu0 %v402, 64
    %v404 = vpop.permute.xlu0 %403
    %v407 = vrot.slane %v324, 7
    %408 = vrot.lane.b32.xlu0 %v407, 96
    %v409 = vpop.permute.xlu0 %408
    %v411 = vsel %vm225, %v404, %v409
    %v413 = vrot.slane %v411, 1
    %v414 = vsel %vm227, %v413, 0
    %416 = vmatprep.subr.mxu0 %v44
    %417 = vmatpush1.msra.mxu0 %v43
    %418 = vmatprep.subr.mxu0 %v46
    %419 = vmatpush1.msra.mxu0 %v45
    %420 = vmatprep.subr.mxu0 %v48
    %421 = vmatpush1.msra.mxu0 %v47
    %422 = vmatprep.subr.mxu0 %v50
    %423 = vmatpush1.msra.mxu0 %v49
    %424 = vmatprep.subr.mxu0 %v52
    %425 = vmatpush1.msra.mxu0 %v51
    %426 = vmatprep.subr.mxu0 %v54
    %427 = vmatpush1.msra.mxu0 %v53
    %428 = vmatprep.subr.mxu0 %v56
    %429 = vmatpush1.msra.mxu0 %v55
    %430 = vmatprep.subr.mxu0 %v58
    %431 = vmatpush1.msra.mxu0 %v57
    %432 = vmatprep.subr.mxu0 0.0
    %433 = vmatpush1.msra.mxu0 0.0
    %434 = vmatprep.subr.mxu0 0.0
    %435 = vmatpush1.msra.mxu0 0.0
    %436 = vmatprep.subr.mxu0 0.0
    %437 = vmatpush1.msra.mxu0 0.0
    %438 = vmatprep.subr.mxu0 0.0
    %439 = vmatpush1.msra.mxu0 0.0
    %440 = vmatprep.subr.mxu0 0.0
    %441 = vmatpush1.msra.mxu0 0.0
    %442 = vmatprep.subr.mxu0 0.0
    %443 = vmatpush1.msra.mxu0 0.0
    %444 = vmatprep.subr.mxu0 0.0
    %445 = vmatpush1.msra.mxu0 0.0
    %446 = vmatprep.subr.mxu0 0.0
    %447 = vmatpush1.msra.mxu0 0.0
    %448 = vmatprep.subr.mxu0 0.0
    %449 = vmatpush1.msra.mxu0 0.0
    %450 = vmatprep.subr.mxu0 0.0
    %451 = vmatpush1.msra.mxu0 0.0
    %452 = vmatprep.subr.mxu0 0.0
    %453 = vmatpush1.msra.mxu0 0.0
    %454 = vmatprep.subr.mxu0 0.0
    %455 = vmatpush1.msra.mxu0 0.0
    %456 = vmatprep.subr.mxu0 0.0
    %457 = vmatpush1.msra.mxu0 0.0
    %458 = vmatprep.subr.mxu0 0.0
    %459 = vmatpush1.msra.mxu0 0.0
    %460 = vmatprep.subr.mxu0 0.0
    %461 = vmatpush1.msra.mxu0 0.0
    %462 = vmatprep.subr.mxu0 0.0
    %463 = vmatpush1.msra.mxu0 0.0
    %464 = vmatprep.subr.mxu0 0.0
    %465 = vmatpush1.msra.mxu0 0.0
    %466 = vmatprep.subr.mxu0 0.0
    %467 = vmatpush1.msra.mxu0 0.0
    %468 = vmatprep.subr.mxu0 0.0
    %469 = vmatpush1.msra.mxu0 0.0
    %470 = vmatprep.subr.mxu0 0.0
    %471 = vmatpush1.msra.mxu0 0.0
    %472 = vmatprep.subr.mxu0 0.0
    %473 = vmatpush1.msra.mxu0 0.0
    %474 = vmatprep.subr.mxu0 0.0
    %475 = vmatpush1.msra.mxu0 0.0
    %476 = vmatprep.subr.mxu0 0.0
    %477 = vmatpush1.msra.mxu0 0.0
    %478 = vmatprep.subr.mxu0 0.0
    %479 = vmatpush1.msra.mxu0 0.0
    %480 = vmatprep.mubr.f32.mxu0 0.0
    %481 = vmatmul.mubr.f32.gmra.mrb[0].mxu0 %v414
    %v482 = vpop.f32.mrb[0].mxu0
    %v483 = vadd.f32 0.0, %v482
    %v484 = vpop.f32.mrb[0].mxu0
    %v485 = vadd.f32 0.0, %v484
    %486 = vdwg.mxu0
    %v487 = vadd.f32 %v483, %v64
    %v488 = vmul.f32 %v487, 0.5
    %v489 = vtanh.pop %v488
    %v490 = vmul.f32 %v489, 0.5
    %v491 = vadd.f32 %v490, 0.5
    %v492 = vtanh.pop %v487
    %v493 = vmul.f32 %v491, %v318
    %495 = vrot.lane.b32.xlu0 %v492, 32
    %v496 = vpop.permute.xlu0 %495
    %v498 = vmul.f32 %v491, %v496
    %500 = vrot.lane.b32.xlu0 %v498, 32
    %v501 = vpop.permute.xlu0 %500
    %v503 = vadd.f32 %v493, %v501
    %v504 = vtanh.pop %v503
    %506 = vrot.lane.b32.xlu0 %v504, 32
    %v507 = vpop.permute.xlu0 %506
    %v509 = vmul.f32 %v491, %v507
    %v510 = vmul.f32 %v509, %v326
    %512 = vrot.lane.b32.xlu0 %v510, 64
    %v513 = vpop.permute.xlu0 %512
    %v515 = vsel %vm333, %v513, 0.0
    %516 = vadd.xlane.f32.xlu0 %v515
    %v517 = vpop.xlane.xlu0 %516
    %v518 = vadd.f32 %v517, %v77
    %v519 = vmul.f32 %v518, 0.5
    %v520 = vtanh.pop %v519
    %v521 = vmul.f32 %v520, 0.5
    %v522 = vadd.f32 %v521, 0.5
    %v524 = vrot.slane %v485, 6
    %v525 = vrot.slane %v485, 7
    %v528 = vadd.f32 %v163, %v524
    %v529 = vadd.f32 %v168, %v525
    %v530 = vmul.f32 %v528, 0.5
    %v531 = vmul.f32 %v529, 0.5
    %v532 = vtanh.pop %v530
    %v533 = vtanh.pop %v531
    %v534 = vmul.f32 %v532, 0.5
    %v535 = vmul.f32 %v533, 0.5
    %v536 = vadd.f32 %v534, 0.5
    %v537 = vadd.f32 %v535, 0.5
    %v538 = vtanh.pop %v528
    %v539 = vtanh.pop %v529
    %v542 = vrot.slane %v384, 7
    %v543 = vrot.slane %v385, 7
    %v546 = vmul.f32 %v536, %v542
    %v547 = vmul.f32 %v537, %v543
    %550 = vrot.lane.b32.xlu0 %v538, 32
    %v551 = vpop.permute.xlu0 %550
    %552 = vrot.lane.b32.xlu0 %v539, 32
    %v553 = vpop.permute.xlu0 %552
    %v556 = vmul.f32 %v536, %v551
    %v557 = vmul.f32 %v537, %v553
    %560 = vrot.lane.b32.xlu0 %v556, 32
    %v561 = vpop.permute.xlu0 %560
    %562 = vrot.lane.b32.xlu0 %v557, 32
    %v563 = vpop.permute.xlu0 %562
    %v566 = vadd.f32 %v546, %v561
    %v567 = vadd.f32 %v547, %v563
    %v568 = vtanh.pop %v566
    %v569 = vtanh.pop %v567
    %572 = vrot.lane.b32.xlu0 %v568, 32
    %v573 = vpop.permute.xlu0 %572
    %574 = vrot.lane.b32.xlu0 %v569, 32
    %v575 = vpop.permute.xlu0 %574
    %v578 = vmul.f32 %v536, %v573
    %v579 = vmul.f32 %v537, %v575
    %v582 = vrot.slane %v579, 7
    %vm583 = vcmask 1043459
    %v584 = vsel %vm583, %v582, %v578
    %585 = vrot.lane.b32.xlu0 %v584, 64
    %v586 = vpop.permute.xlu0 %585
    %v589 = vrot.slane %v509, 6
    %590 = vrot.lane.b32.xlu0 %v589, 96
    %v591 = vpop.permute.xlu0 %590
    %v593 = vsel %vm225, %v586, %v591
    %v595 = vrot.slane %v593, 2
    %v596 = vsel %vm227, %v595, 0
    %598 = vmatprep.subr.mxu0 %v44
    %599 = vmatpush1.msra.mxu0 %v43
    %600 = vmatprep.subr.mxu0 %v46
    %601 = vmatpush1.msra.mxu0 %v45
    %602 = vmatprep.subr.mxu0 %v48
    %603 = vmatpush1.msra.mxu0 %v47
    %604 = vmatprep.subr.mxu0 %v50
    %605 = vmatpush1.msra.mxu0 %v49
    %606 = vmatprep.subr.mxu0 %v52
    %607 = vmatpush1.msra.mxu0 %v51
    %608 = vmatprep.subr.mxu0 %v54
    %609 = vmatpush1.msra.mxu0 %v53
    %610 = vmatprep.subr.mxu0 %v56
    %611 = vmatpush1.msra.mxu0 %v55
    %612 = vmatprep.subr.mxu0 %v58
    %613 = vmatpush1.msra.mxu0 %v57
    %614 = vmatprep.subr.mxu0 0.0
    %615 = vmatpush1.msra.mxu0 0.0
    %616 = vmatprep.subr.mxu0 0.0
    %617 = vmatpush1.msra.mxu0 0.0
    %618 = vmatprep.subr.mxu0 0.0
    %619 = vmatpush1.msra.mxu0 0.0
    %620 = vmatprep.subr.mxu0 0.0
    %621 = vmatpush1.msra.mxu0 0.0
    %622 = vmatprep.subr.mxu0 0.0
    %623 = vmatpush1.msra.mxu0 0.0
    %624 = vmatprep.subr.mxu0 0.0
    %625 = vmatpush1.msra.mxu0 0.0
    %626 = vmatprep.subr.mxu0 0.0
    %627 = vmatpush1.msra.mxu0 0.0
    %628 = vmatprep.subr.mxu0 0.0
    %629 = vmatpush1.msra.mxu0 0.0
    %630 = vmatprep.subr.mxu0 0.0
    %631 = vmatpush1.msra.mxu0 0.0
    %632 = vmatprep.subr.mxu0 0.0
    %633 = vmatpush1.msra.mxu0 0.0
    %634 = vmatprep.subr.mxu0 0.0
    %635 = vmatpush1.msra.mxu0 0.0
    %636 = vmatprep.subr.mxu0 0.0
    %637 = vmatpush1.msra.mxu0 0.0
    %638 = vmatprep.subr.mxu0 0.0
    %639 = vmatpush1.msra.mxu0 0.0
    %640 = vmatprep.subr.mxu0 0.0
    %641 = vmatpush1.msra.mxu0 0.0
    %642 = vmatprep.subr.mxu0 0.0
    %643 = vmatpush1.msra.mxu0 0.0
    %644 = vmatprep.subr.mxu0 0.0
    %645 = vmatpush1.msra.mxu0 0.0
    %646 = vmatprep.subr.mxu0 0.0
    %647 = vmatpush1.msra.mxu0 0.0
    %648 = vmatprep.subr.mxu0 0.0
    %649 = vmatpush1.msra.mxu0 0.0
    %650 = vmatprep.subr.mxu0 0.0
    %651 = vmatpush1.msra.mxu0 0.0
    %652 = vmatprep.subr.mxu0 0.0
    %653 = vmatpush1.msra.mxu0 0.0
    %654 = vmatprep.subr.mxu0 0.0
    %655 = vmatpush1.msra.mxu0 0.0
    %656 = vmatprep.subr.mxu0 0.0
    %657 = vmatpush1.msra.mxu0 0.0
    %658 = vmatprep.subr.mxu0 0.0
    %659 = vmatpush1.msra.mxu0 0.0
    %660 = vmatprep.subr.mxu0 0.0
    %661 = vmatpush1.msra.mxu0 0.0
    %662 = vmatprep.mubr.f32.mxu0 0.0
    %663 = vmatmul.mubr.f32.gmra.mrb[0].mxu0 %v596
    %v664 = vpop.f32.mrb[0].mxu0
    %v665 = vadd.f32 0.0, %v664
    %v666 = vpop.f32.mrb[0].mxu0
    %v667 = vadd.f32 0.0, %v666
    %668 = vdwg.mxu0
    %v669 = vadd.f32 %v665, %v64
    %v670 = vmul.f32 %v669, 0.5
    %v671 = vtanh.pop %v670
    %v672 = vmul.f32 %v671, 0.5
    %v673 = vadd.f32 %v672, 0.5
    %v674 = vtanh.pop %v669
    %v675 = vmul.f32 %v673, %v503
    %677 = vrot.lane.b32.xlu0 %v674, 32
    %v678 = vpop.permute.xlu0 %677
    %v680 = vmul.f32 %v673, %v678
    %682 = vrot.lane.b32.xlu0 %v680, 32
    %v683 = vpop.permute.xlu0 %682
    %v685 = vadd.f32 %v675, %v683
    %v686 = vtanh.pop %v685
    %688 = vrot.lane.b32.xlu0 %v686, 32
    %v689 = vpop.permute.xlu0 %688
    %v691 = vmul.f32 %v673, %v689
    %v692 = vmul.f32 %v691, %v326
    %694 = vrot.lane.b32.xlu0 %v692, 64
    %v695 = vpop.permute.xlu0 %694
    %v697 = vsel %vm333, %v695, 0.0
    %698 = vadd.xlane.f32.xlu0 %v697
    %v699 = vpop.xlane.xlu0 %698
    %v700 = vadd.f32 %v699, %v77
    %v701 = vmul.f32 %v700, 0.5
    %v702 = vtanh.pop %v701
    %v703 = vmul.f32 %v702, 0.5
    %v704 = vadd.f32 %v703, 0.5
    %v706 = vrot.slane %v667, 5
    %v707 = vrot.slane %v667, 6
    %v710 = vadd.f32 %v163, %v706
    %v711 = vadd.f32 %v168, %v707
    %v712 = vmul.f32 %v710, 0.5
    %v713 = vmul.f32 %v711, 0.5
    %v714 = vtanh.pop %v712
    %v715 = vtanh.pop %v713
    %v716 = vmul.f32 %v714, 0.5
    %v717 = vmul.f32 %v715, 0.5
    %v718 = vadd.f32 %v716, 0.5
    %v719 = vadd.f32 %v717, 0.5
    %v720 = vtanh.pop %v710
    %v721 = vtanh.pop %v711
    %v724 = vrot.slane %v566, 7
    %v725 = vrot.slane %v567, 7
    %v728 = vmul.f32 %v718, %v724
    %v729 = vmul.f32 %v719, %v725
    %732 = vrot.lane.b32.xlu0 %v720, 32
    %v733 = vpop.permute.xlu0 %732
    %734 = vrot.lane.b32.xlu0 %v721, 32
    %v735 = vpop.permute.xlu0 %734
    %v738 = vmul.f32 %v718, %v733
    %v739 = vmul.f32 %v719, %v735
    %742 = vrot.lane.b32.xlu0 %v738, 32
    %v743 = vpop.permute.xlu0 %742
    %744 = vrot.lane.b32.xlu0 %v739, 32
    %v745 = vpop.permute.xlu0 %744
    %v748 = vadd.f32 %v728, %v743
    %v749 = vadd.f32 %v729, %v745
    %v750 = vtanh.pop %v748
    %v751 = vtanh.pop %v749
    %754 = vrot.lane.b32.xlu0 %v750, 32
    %v755 = vpop.permute.xlu0 %754
    %756 = vrot.lane.b32.xlu0 %v751, 32
    %v757 = vpop.permute.xlu0 %756
    %v760 = vmul.f32 %v718, %v755
    %v761 = vmul.f32 %v719, %v757
    %v764 = vrot.slane %v761, 7
    %vm765 = vcmask 1044484
    %v766 = vsel %vm765, %v764, %v760
    %767 = vrot.lane.b32.xlu0 %v766, 64
    %v768 = vpop.permute.xlu0 %767
    %v771 = vrot.slane %v691, 5
    %772 = vrot.lane.b32.xlu0 %v771, 96
    %v773 = vpop.permute.xlu0 %772
    %v775 = vsel %vm225, %v768, %v773
    %v777 = vrot.slane %v775, 3
    %v778 = vsel %vm227, %v777, 0
    %780 = vmatprep.subr.mxu0 %v44
    %781 = vmatpush1.msra.mxu0 %v43
    %782 = vmatprep.subr.mxu0 %v46
    %783 = vmatpush1.msra.mxu0 %v45
    %784 = vmatprep.subr.mxu0 %v48
    %785 = vmatpush1.msra.mxu0 %v47
    %786 = vmatprep.subr.mxu0 %v50
    %787 = vmatpush1.msra.mxu0 %v49
    %788 = vmatprep.subr.mxu0 %v52
    %789 = vmatpush1.msra.mxu0 %v51
    %790 = vmatprep.subr.mxu0 %v54
    %791 = vmatpush1.msra.mxu0 %v53
    %792 = vmatprep.subr.mxu0 %v56
    %793 = vmatpush1.msra.mxu0 %v55
    %794 = vmatprep.subr.mxu0 %v58
    %795 = vmatpush1.msra.mxu0 %v57
    %796 = vmatprep.subr.mxu0 0.0
    %797 = vmatpush1.msra.mxu0 0.0
    %798 = vmatprep.subr.mxu0 0.0
    %799 = vmatpush1.msra.mxu0 0.0
    %800 = vmatprep.subr.mxu0 0.0
    %801 = vmatpush1.msra.mxu0 0.0
    %802 = vmatprep.subr.mxu0 0.0
    %803 = vmatpush1.msra.mxu0 0.0
    %804 = vmatprep.subr.mxu0 0.0
    %805 = vmatpush1.msra.mxu0 0.0
    %806 = vmatprep.subr.mxu0 0.0
    %807 = vmatpush1.msra.mxu0 0.0
    %808 = vmatprep.subr.mxu0 0.0
    %809 = vmatpush1.msra.mxu0 0.0
    %810 = vmatprep.subr.mxu0 0.0
    %811 = vmatpush1.msra.mxu0 0.0
    %812 = vmatprep.subr.mxu0 0.0
    %813 = vmatpush1.msra.mxu0 0.0
    %814 = vmatprep.subr.mxu0 0.0
    %815 = vmatpush1.msra.mxu0 0.0
    %816 = vmatprep.subr.mxu0 0.0
    %817 = vmatpush1.msra.mxu0 0.0
    %818 = vmatprep.subr.mxu0 0.0
    %819 = vmatpush1.msra.mxu0 0.0
    %820 = vmatprep.subr.mxu0 0.0
    %821 = vmatpush1.msra.mxu0 0.0
    %822 = vmatprep.subr.mxu0 0.0
    %823 = vmatpush1.msra.mxu0 0.0
    %824 = vmatprep.subr.mxu0 0.0
    %825 = vmatpush1.msra.mxu0 0.0
    %826 = vmatprep.subr.mxu0 0.0
    %827 = vmatpush1.msra.mxu0 0.0
    %828 = vmatprep.subr.mxu0 0.0
    %829 = vmatpush1.msra.mxu0 0.0
    %830 = vmatprep.subr.mxu0 0.0
    %831 = vmatpush1.msra.mxu0 0.0
    %832 = vmatprep.subr.mxu0 0.0
    %833 = vmatpush1.msra.mxu0 0.0
    %834 = vmatprep.subr.mxu0 0.0
    %835 = vmatpush1.msra.mxu0 0.0
    %836 = vmatprep.subr.mxu0 0.0
    %837 = vmatpush1.msra.mxu0 0.0
    %838 = vmatprep.subr.mxu0 0.0
    %839 = vmatpush1.msra.mxu0 0.0
    %840 = vmatprep.subr.mxu0 0.0
    %841 = vmatpush1.msra.mxu0 0.0
    %842 = vmatprep.subr.mxu0 0.0
    %843 = vmatpush1.msra.mxu0 0.0
    %844 = vmatprep.mubr.f32.mxu0 0.0
    %845 = vmatmul.mubr.f32.gmra.mrb[0].mxu0 %v778
    %v846 = vpop.f32.mrb[0].mxu0
    %v847 = vadd.f32 0.0, %v846
    %v848 = vpop.f32.mrb[0].mxu0
    %v849 = vadd.f32 0.0, %v848
    %850 = vdwg.mxu0
    %v851 = vadd.f32 %v847, %v64
    %v852 = vmul.f32 %v851, 0.5
    %v853 = vtanh.pop %v852
    %v854 = vmul.f32 %v853, 0.5
    %v855 = vadd.f32 %v854, 0.5
    %v856 = vtanh.pop %v851
    %v857 = vmul.f32 %v855, %v685
    %859 = vrot.lane.b32.xlu0 %v856, 32
    %v860 = vpop.permute.xlu0 %859
    %v862 = vmul.f32 %v855, %v860
    %864 = vrot.lane.b32.xlu0 %v862, 32
    %v865 = vpop.permute.xlu0 %864
    %v867 = vadd.f32 %v857, %v865
    %v868 = vtanh.pop %v867
    %870 = vrot.lane.b32.xlu0 %v868, 32
    %v871 = vpop.permute.xlu0 %870
    %v873 = vmul.f32 %v855, %v871
    %v874 = vmul.f32 %v873, %v326
    %876 = vrot.lane.b32.xlu0 %v874, 64
    %v877 = vpop.permute.xlu0 %876
    %v879 = vsel %vm333, %v877, 0.0
    %880 = vadd.xlane.f32.xlu0 %v879
    %v881 = vpop.xlane.xlu0 %880
    %v882 = vadd.f32 %v881, %v77
    %v883 = vmul.f32 %v882, 0.5
    %v884 = vtanh.pop %v883
    %v885 = vmul.f32 %v884, 0.5
    %v886 = vadd.f32 %v885, 0.5
    %v888 = vrot.slane %v849, 4
    %v889 = vrot.slane %v849, 5
    %v892 = vadd.f32 %v163, %v888
    %v893 = vadd.f32 %v168, %v889
    %v894 = vmul.f32 %v892, 0.5
    %v895 = vmul.f32 %v893, 0.5
    %v896 = vtanh.pop %v894
    %v897 = vtanh.pop %v895
    %v898 = vmul.f32 %v896, 0.5
    %v899 = vmul.f32 %v897, 0.5
    %v900 = vadd.f32 %v898, 0.5
    %v901 = vadd.f32 %v899, 0.5
    %v902 = vtanh.pop %v892
    %v903 = vtanh.pop %v893
    %v906 = vrot.slane %v748, 7
    %v907 = vrot.slane %v749, 7
    %v910 = vmul.f32 %v900, %v906
    %v911 = vmul.f32 %v901, %v907
    %914 = vrot.lane.b32.xlu0 %v902, 32
    %v915 = vpop.permute.xlu0 %914
    %916 = vrot.lane.b32.xlu0 %v903, 32
    %v917 = vpop.permute.xlu0 %916
    %v920 = vmul.f32 %v900, %v915
    %v921 = vmul.f32 %v901, %v917
    %924 = vrot.lane.b32.xlu0 %v920, 32
    %v925 = vpop.permute.xlu0 %924
    %926 = vrot.lane.b32.xlu0 %v921, 32
    %v927 = vpop.permute.xlu0 %926
    %v930 = vadd.f32 %v910, %v925
    %v931 = vadd.f32 %v911, %v927
    %v932 = vtanh.pop %v930
    %v933 = vtanh.pop %v931
    %936 = vrot.lane.b32.xlu0 %v932, 32
    %v937 = vpop.permute.xlu0 %936
    %938 = vrot.lane.b32.xlu0 %v933, 32
    %v939 = vpop.permute.xlu0 %938
    %v942 = vmul.f32 %v900, %v937
    %v943 = vmul.f32 %v901, %v939
    %v946 = vrot.slane %v943, 7
    %vm947 = vcmask 1045509
    %v948 = vsel %vm947, %v946, %v942
    %949 = vrot.lane.b32.xlu0 %v948, 64
    %v950 = vpop.permute.xlu0 %949
    %v953 = vrot.slane %v873, 4
    %954 = vrot.lane.b32.xlu0 %v953, 96
    %v955 = vpop.permute.xlu0 %954
    %v957 = vsel %vm225, %v950, %v955
    %v959 = vrot.slane %v957, 4
    %v960 = vsel %vm227, %v959, 0
    %962 = vmatprep.subr.mxu0 %v44
    %963 = vmatpush1.msra.mxu0 %v43
    %964 = vmatprep.subr.mxu0 %v46
    %965 = vmatpush1.msra.mxu0 %v45
    %966 = vmatprep.subr.mxu0 %v48
    %967 = vmatpush1.msra.mxu0 %v47
    %968 = vmatprep.subr.mxu0 %v50
    %969 = vmatpush1.msra.mxu0 %v49
    %970 = vmatprep.subr.mxu0 %v52
    %971 = vmatpush1.msra.mxu0 %v51
    %972 = vmatprep.subr.mxu0 %v54
    %973 = vmatpush1.msra.mxu0 %v53
    %974 = vmatprep.subr.mxu0 %v56
    %975 = vmatpush1.msra.mxu0 %v55
    %976 = vmatprep.subr.mxu0 %v58
    %977 = vmatpush1.msra.mxu0 %v57
    %978 = vmatprep.subr.mxu0 0.0
    %979 = vmatpush1.msra.mxu0 0.0
    %980 = vmatprep.subr.mxu0 0.0
    %981 = vmatpush1.msra.mxu0 0.0
    %982 = vmatprep.subr.mxu0 0.0
    %983 = vmatpush1.msra.mxu0 0.0
    %984 = vmatprep.subr.mxu0 0.0
    %985 = vmatpush1.msra.mxu0 0.0
    %986 = vmatprep.subr.mxu0 0.0
    %987 = vmatpush1.msra.mxu0 0.0
    %988 = vmatprep.subr.mxu0 0.0
    %989 = vmatpush1.msra.mxu0 0.0
    %990 = vmatprep.subr.mxu0 0.0
    %991 = vmatpush1.msra.mxu0 0.0
    %992 = vmatprep.subr.mxu0 0.0
    %993 = vmatpush1.msra.mxu0 0.0
    %994 = vmatprep.subr.mxu0 0.0
    %995 = vmatpush1.msra.mxu0 0.0
    %996 = vmatprep.subr.mxu0 0.0
    %997 = vmatpush1.msra.mxu0 0.0
    %998 = vmatprep.subr.mxu0 0.0
    %999 = vmatpush1.msra.mxu0 0.0
    %1000 = vmatprep.subr.mxu0 0.0
    %1001 = vmatpush1.msra.mxu0 0.0
    %1002 = vmatprep.subr.mxu0 0.0
    %1003 = vmatpush1.msra.mxu0 0.0
    %1004 = vmatprep.subr.mxu0 0.0
    %1005 = vmatpush1.msra.mxu0 0.0
    %1006 = vmatprep.subr.mxu0 0.0
    %1007 = vmatpush1.msra.mxu0 0.0
    %1008 = vmatprep.subr.mxu0 0.0
    %1009 = vmatpush1.msra.mxu0 0.0
    %1010 = vmatprep.subr.mxu0 0.0
    %1011 = vmatpush1.msra.mxu0 0.0
    %1012 = vmatprep.subr.mxu0 0.0
    %1013 = vmatpush1.msra.mxu0 0.0
    %1014 = vmatprep.subr.mxu0 0.0
    %1015 = vmatpush1.msra.mxu0 0.0
    %1016 = vmatprep.subr.mxu0 0.0
    %1017 = vmatpush1.msra.mxu0 0.0
    %1018 = vmatprep.subr.mxu0 0.0
    %1019 = vmatpush1.msra.mxu0 0.0
    %1020 = vmatprep.subr.mxu0 0.0
    %1021 = vmatpush1.msra.mxu0 0.0
    %1022 = vmatprep.subr.mxu0 0.0
    %1023 = vmatpush1.msra.mxu0 0.0
    %1024 = vmatprep.subr.mxu0 0.0
    %1025 = vmatpush1.msra.mxu0 0.0
    %1026 = vmatprep.mubr.f32.mxu0 0.0
    %1027 = vmatmul.mubr.f32.gmra.mrb[0].mxu0 %v960
    %v1028 = vpop.f32.mrb[0].mxu0
    %v1029 = vadd.f32 0.0, %v1028
    %v1030 = vpop.f32.mrb[0].mxu0
    %v1031 = vadd.f32 0.0, %v1030
    %1032 = vdwg.mxu0
    %v1033 = vadd.f32 %v1029, %v64
    %v1034 = vmul.f32 %v1033, 0.5
    %v1035 = vtanh.pop %v1034
    %v1036 = vmul.f32 %v1035, 0.5
    %v1037 = vadd.f32 %v1036, 0.5
    %v1038 = vtanh.pop %v1033
    %v1039 = vmul.f32 %v1037, %v867
    %1041 = vrot.lane.b32.xlu0 %v1038, 32
    %v1042 = vpop.permute.xlu0 %1041
    %v1044 = vmul.f32 %v1037, %v1042
    %1046 = vrot.lane.b32.xlu0 %v1044, 32
    %v1047 = vpop.permute.xlu0 %1046
    %v1049 = vadd.f32 %v1039, %v1047
    %v1050 = vtanh.pop %v1049
    %1052 = vrot.lane.b32.xlu0 %v1050, 32
    %v1053 = vpop.permute.xlu0 %1052
    %v1055 = vmul.f32 %v1037, %v1053
    %v1056 = vmul.f32 %v1055, %v326
    %1058 = vrot.lane.b32.xlu0 %v1056, 64
    %v1059 = vpop.permute.xlu0 %1058
    %v1061 = vsel %vm333, %v1059, 0.0
    %1062 = vadd.xlane.f32.xlu0 %v1061
    %v1063 = vpop.xlane.xlu0 %1062
    %v1064 = vadd.f32 %v1063, %v77
    %v1065 = vmul.f32 %v1064, 0.5
    %v1066 = vtanh.pop %v1065
    %v1067 = vmul.f32 %v1066, 0.5
    %v1068 = vadd.f32 %v1067, 0.5
    %v1070 = vrot.slane %v1031, 3
    %v1071 = vrot.slane %v1031, 4
    %v1074 = vadd.f32 %v163, %v1070
    %v1075 = vadd.f32 %v168, %v1071
    %v1076 = vmul.f32 %v1074, 0.5
    %v1077 = vmul.f32 %v1075, 0.5
    %v1078 = vtanh.pop %v1076
    %v1079 = vtanh.pop %v1077
    %v1080 = vmul.f32 %v1078, 0.5
    %v1081 = vmul.f32 %v1079, 0.5
    %v1082 = vadd.f32 %v1080, 0.5
    %v1083 = vadd.f32 %v1081, 0.5
    %v1084 = vtanh.pop %v1074
    %v1085 = vtanh.pop %v1075
    %v1088 = vrot.slane %v930, 7
    %v1089 = vrot.slane %v931, 7
    %v1092 = vmul.f32 %v1082, %v1088
    %v1093 = vmul.f32 %v1083, %v1089
    %1096 = vrot.lane.b32.xlu0 %v1084, 32
    %v1097 = vpop.permute.xlu0 %1096
    %1098 = vrot.lane.b32.xlu0 %v1085, 32
    %v1099 = vpop.permute.xlu0 %1098
    %v1102 = vmul.f32 %v1082, %v1097
    %v1103 = vmul.f32 %v1083, %v1099
    %1106 = vrot.lane.b32.xlu0 %v1102, 32
    %v1107 = vpop.permute.xlu0 %1106
    %1108 = vrot.lane.b32.xlu0 %v1103, 32
    %v1109 = vpop.permute.xlu0 %1108
    %v1112 = vadd.f32 %v1092, %v1107
    %v1113 = vadd.f32 %v1093, %v1109
    %v1114 = vtanh.pop %v1112
    %v1115 = vtanh.pop %v1113
    %1118 = vrot.lane.b32.xlu0 %v1114, 32
    %v1119 = vpop.permute.xlu0 %1118
    %1120 = vrot.lane.b32.xlu0 %v1115, 32
    %v1121 = vpop.permute.xlu0 %1120
    %v1124 = vmul.f32 %v1082, %v1119
    %v1125 = vmul.f32 %v1083, %v1121
    %v1128 = vrot.slane %v1125, 7
    %vm1129 = vcmask 1046534
    %v1130 = vsel %vm1129, %v1128, %v1124
    %1131 = vrot.lane.b32.xlu0 %v1130, 64
    %v1132 = vpop.permute.xlu0 %1131
    %v1135 = vrot.slane %v1055, 3
    %1136 = vrot.lane.b32.xlu0 %v1135, 96
    %v1137 = vpop.permute.xlu0 %1136
    %v1139 = vsel %vm225, %v1132, %v1137
    %v1141 = vrot.slane %v1139, 5
    %v1142 = vsel %vm227, %v1141, 0
    %1144 = vmatprep.subr.mxu0 %v44
    %1145 = vmatpush1.msra.mxu0 %v43
    %1146 = vmatprep.subr.mxu0 %v46
    %1147 = vmatpush1.msra.mxu0 %v45
    %1148 = vmatprep.subr.mxu0 %v48
    %1149 = vmatpush1.msra.mxu0 %v47
    %1150 = vmatprep.subr.mxu0 %v50
    %1151 = vmatpush1.msra.mxu0 %v49
    %1152 = vmatprep.subr.mxu0 %v52
    %1153 = vmatpush1.msra.mxu0 %v51
    %1154 = vmatprep.subr.mxu0 %v54
    %1155 = vmatpush1.msra.mxu0 %v53
    %1156 = vmatprep.subr.mxu0 %v56
    %1157 = vmatpush1.msra.mxu0 %v55
    %1158 = vmatprep.subr.mxu0 %v58
    %1159 = vmatpush1.msra.mxu0 %v57
    %1160 = vmatprep.subr.mxu0 0.0
    %1161 = vmatpush1.msra.mxu0 0.0
    %1162 = vmatprep.subr.mxu0 0.0
    %1163 = vmatpush1.msra.mxu0 0.0
    %1164 = vmatprep.subr.mxu0 0.0
    %1165 = vmatpush1.msra.mxu0 0.0
    %1166 = vmatprep.subr.mxu0 0.0
    %1167 = vmatpush1.msra.mxu0 0.0
    %1168 = vmatprep.subr.mxu0 0.0
    %1169 = vmatpush1.msra.mxu0 0.0
    %1170 = vmatprep.subr.mxu0 0.0
    %1171 = vmatpush1.msra.mxu0 0.0
    %1172 = vmatprep.subr.mxu0 0.0
    %1173 = vmatpush1.msra.mxu0 0.0
    %1174 = vmatprep.subr.mxu0 0.0
    %1175 = vmatpush1.msra.mxu0 0.0
    %1176 = vmatprep.subr.mxu0 0.0
    %1177 = vmatpush1.msra.mxu0 0.0
    %1178 = vmatprep.subr.mxu0 0.0
    %1179 = vmatpush1.msra.mxu0 0.0
    %1180 = vmatprep.subr.mxu0 0.0
    %1181 = vmatpush1.msra.mxu0 0.0
    %1182 = vmatprep.subr.mxu0 0.0
    %1183 = vmatpush1.msra.mxu0 0.0
    %1184 = vmatprep.subr.mxu0 0.0
    %1185 = vmatpush1.msra.mxu0 0.0
    %1186 = vmatprep.subr.mxu0 0.0
    %1187 = vmatpush1.msra.mxu0 0.0
    %1188 = vmatprep.subr.mxu0 0.0
    %1189 = vmatpush1.msra.mxu0 0.0
    %1190 = vmatprep.subr.mxu0 0.0
    %1191 = vmatpush1.msra.mxu0 0.0
    %1192 = vmatprep.subr.mxu0 0.0
    %1193 = vmatpush1.msra.mxu0 0.0
    %1194 = vmatprep.subr.mxu0 0.0
    %1195 = vmatpush1.msra.mxu0 0.0
    %1196 = vmatprep.subr.mxu0 0.0
    %1197 = vmatpush1.msra.mxu0 0.0
    %1198 = vmatprep.subr.mxu0 0.0
    %1199 = vmatpush1.msra.mxu0 0.0
    %1200 = vmatprep.subr.mxu0 0.0
    %1201 = vmatpush1.msra.mxu0 0.0
    %1202 = vmatprep.subr.mxu0 0.0
    %1203 = vmatpush1.msra.mxu0 0.0
    %1204 = vmatprep.subr.mxu0 0.0
    %1205 = vmatpush1.msra.mxu0 0.0
    %1206 = vmatprep.subr.mxu0 0.0
    %1207 = vmatpush1.msra.mxu0 0.0
    %1208 = vmatprep.mubr.f32.mxu0 0.0
    %1209 = vmatmul.mubr.f32.gmra.mrb[0].mxu0 %v1142
    %v1210 = vpop.f32.mrb[0].mxu0
    %v1211 = vadd.f32 0.0, %v1210
    %v1212 = vpop.f32.mrb[0].mxu0
    %v1213 = vadd.f32 0.0, %v1212
    %1214 = vdwg.mxu0
    %v1215 = vadd.f32 %v1211, %v64
    %v1216 = vmul.f32 %v1215, 0.5
    %v1217 = vtanh.pop %v1216
    %v1218 = vmul.f32 %v1217, 0.5
    %v1219 = vadd.f32 %v1218, 0.5
    %v1220 = vtanh.pop %v1215
    %v1221 = vmul.f32 %v1219, %v1049
    %1223 = vrot.lane.b32.xlu0 %v1220, 32
    %v1224 = vpop.permute.xlu0 %1223
    %v1226 = vmul.f32 %v1219, %v1224
    %1228 = vrot.lane.b32.xlu0 %v1226, 32
    %v1229 = vpop.permute.xlu0 %1228
    %v1231 = vadd.f32 %v1221, %v1229
    %v1232 = vtanh.pop %v1231
    %1234 = vrot.lane.b32.xlu0 %v1232, 32
    %v1235 = vpop.permute.xlu0 %1234
    %v1237 = vmul.f32 %v1219, %v1235
    %v1238 = vmul.f32 %v1237, %v326
    %1240 = vrot.lane.b32.xlu0 %v1238, 64
    %v1241 = vpop.permute.xlu0 %1240
    %v1243 = vsel %vm333, %v1241, 0.0
    %1244 = vadd.xlane.f32.xlu0 %v1243
    %v1245 = vpop.xlane.xlu0 %1244
    %v1246 = vadd.f32 %v1245, %v77
    %v1247 = vmul.f32 %v1246, 0.5
    %v1248 = vtanh.pop %v1247
    %v1249 = vmul.f32 %v1248, 0.5
    %v1250 = vadd.f32 %v1249, 0.5
    %v1252 = vrot.slane %v1213, 2
    %v1253 = vrot.slane %v1213, 3
    %v1256 = vadd.f32 %v163, %v1252
    %v1257 = vadd.f32 %v168, %v1253
    %v1258 = vmul.f32 %v1256, 0.5
    %v1259 = vmul.f32 %v1257, 0.5
    %v1260 = vtanh.pop %v1258
    %v1261 = vtanh.pop %v1259
    %v1262 = vmul.f32 %v1260, 0.5
    %v1263 = vmul.f32 %v1261, 0.5
    %v1264 = vadd.f32 %v1262, 0.5
    %v1265 = vadd.f32 %v1263, 0.5
    %v1266 = vtanh.pop %v1256
    %v1267 = vtanh.pop %v1257
    %v1270 = vrot.slane %v1112, 7
    %v1271 = vrot.slane %v1113, 7
    %v1274 = vmul.f32 %v1264, %v1270
    %v1275 = vmul.f32 %v1265, %v1271
    %1278 = vrot.lane.b32.xlu0 %v1266, 32
    %v1279 = vpop.permute.xlu0 %1278
    %1280 = vrot.lane.b32.xlu0 %v1267, 32
    %v1281 = vpop.permute.xlu0 %1280
    %v1284 = vmul.f32 %v1264, %v1279
    %v1285 = vmul.f32 %v1265, %v1281
    %1288 = vrot.lane.b32.xlu0 %v1284, 32
    %v1289 = vpop.permute.xlu0 %1288
    %1290 = vrot.lane.b32.xlu0 %v1285, 32
    %v1291 = vpop.permute.xlu0 %1290
    %v1294 = vadd.f32 %v1274, %v1289
    %v1295 = vadd.f32 %v1275, %v1291
    %v1296 = vtanh.pop %v1294
    %v1297 = vtanh.pop %v1295
    %1300 = vrot.lane.b32.xlu0 %v1296, 32
    %v1301 = vpop.permute.xlu0 %1300
    %1302 = vrot.lane.b32.xlu0 %v1297, 32
    %v1303 = vpop.permute.xlu0 %1302
    %v1306 = vmul.f32 %v1264, %v1301
    %v1307 = vmul.f32 %v1265, %v1303
    %v1310 = vrot.slane %v1307, 7
    %vm1311 = vcmask 1047559
    %v1312 = vsel %vm1311, %v1310, %v1306
    %1313 = vrot.lane.b32.xlu0 %v1312, 64
    %v1314 = vpop.permute.xlu0 %1313
    %v1317 = vrot.slane %v1237, 2
    %1318 = vrot.lane.b32.xlu0 %v1317, 96
    %v1319 = vpop.permute.xlu0 %1318
    %v1321 = vsel %vm225, %v1314, %v1319
    %v1323 = vrot.slane %v1321, 6
    %v1324 = vsel %vm227, %v1323, 0
    %1326 = vmatprep.subr.mxu0 %v44
    %1327 = vmatpush1.msra.mxu0 %v43
    %1328 = vmatprep.subr.mxu0 %v46
    %1329 = vmatpush1.msra.mxu0 %v45
    %1330 = vmatprep.subr.mxu0 %v48
    %1331 = vmatpush1.msra.mxu0 %v47
    %1332 = vmatprep.subr.mxu0 %v50
    %1333 = vmatpush1.msra.mxu0 %v49
    %1334 = vmatprep.subr.mxu0 %v52
    %1335 = vmatpush1.msra.mxu0 %v51
    %1336 = vmatprep.subr.mxu0 %v54
    %1337 = vmatpush1.msra.mxu0 %v53
    %1338 = vmatprep.subr.mxu0 %v56
    %1339 = vmatpush1.msra.mxu0 %v55
    %1340 = vmatprep.subr.mxu0 %v58
    %1341 = vmatpush1.msra.mxu0 %v57
    %1342 = vmatprep.subr.mxu0 0.0
    %1343 = vmatpush1.msra.mxu0 0.0
    %1344 = vmatprep.subr.mxu0 0.0
    %1345 = vmatpush1.msra.mxu0 0.0
    %1346 = vmatprep.subr.mxu0 0.0
    %1347 = vmatpush1.msra.mxu0 0.0
    %1348 = vmatprep.subr.mxu0 0.0
    %1349 = vmatpush1.msra.mxu0 0.0
    %1350 = vmatprep.subr.mxu0 0.0
    %1351 = vmatpush1.msra.mxu0 0.0
    %1352 = vmatprep.subr.mxu0 0.0
    %1353 = vmatpush1.msra.mxu0 0.0
    %1354 = vmatprep.subr.mxu0 0.0
    %1355 = vmatpush1.msra.mxu0 0.0
    %1356 = vmatprep.subr.mxu0 0.0
    %1357 = vmatpush1.msra.mxu0 0.0
    %1358 = vmatprep.subr.mxu0 0.0
    %1359 = vmatpush1.msra.mxu0 0.0
    %1360 = vmatprep.subr.mxu0 0.0
    %1361 = vmatpush1.msra.mxu0 0.0
    %1362 = vmatprep.subr.mxu0 0.0
    %1363 = vmatpush1.msra.mxu0 0.0
    %1364 = vmatprep.subr.mxu0 0.0
    %1365 = vmatpush1.msra.mxu0 0.0
    %1366 = vmatprep.subr.mxu0 0.0
    %1367 = vmatpush1.msra.mxu0 0.0
    %1368 = vmatprep.subr.mxu0 0.0
    %1369 = vmatpush1.msra.mxu0 0.0
    %1370 = vmatprep.subr.mxu0 0.0
    %1371 = vmatpush1.msra.mxu0 0.0
    %1372 = vmatprep.subr.mxu0 0.0
    %1373 = vmatpush1.msra.mxu0 0.0
    %1374 = vmatprep.subr.mxu0 0.0
    %1375 = vmatpush1.msra.mxu0 0.0
    %1376 = vmatprep.subr.mxu0 0.0
    %1377 = vmatpush1.msra.mxu0 0.0
    %1378 = vmatprep.subr.mxu0 0.0
    %1379 = vmatpush1.msra.mxu0 0.0
    %1380 = vmatprep.subr.mxu0 0.0
    %1381 = vmatpush1.msra.mxu0 0.0
    %1382 = vmatprep.subr.mxu0 0.0
    %1383 = vmatpush1.msra.mxu0 0.0
    %1384 = vmatprep.subr.mxu0 0.0
    %1385 = vmatpush1.msra.mxu0 0.0
    %1386 = vmatprep.subr.mxu0 0.0
    %1387 = vmatpush1.msra.mxu0 0.0
    %1388 = vmatprep.subr.mxu0 0.0
    %1389 = vmatpush1.msra.mxu0 0.0
    %1390 = vmatprep.mubr.f32.mxu0 0.0
    %1391 = vmatmul.mubr.f32.gmra.mrb[0].mxu0 %v1324
    %v1392 = vpop.f32.mrb[0].mxu0
    %v1393 = vadd.f32 0.0, %v1392
    %v1394 = vpop.f32.mrb[0].mxu0
    %v1395 = vadd.f32 0.0, %v1394
    %1396 = vdwg.mxu0
    %v1397 = vadd.f32 %v1393, %v64
    %v1398 = vmul.f32 %v1397, 0.5
    %v1399 = vtanh.pop %v1398
    %v1400 = vmul.f32 %v1399, 0.5
    %v1401 = vadd.f32 %v1400, 0.5
    %v1402 = vtanh.pop %v1397
    %v1403 = vmul.f32 %v1401, %v1231
    %1405 = vrot.lane.b32.xlu0 %v1402, 32
    %v1406 = vpop.permute.xlu0 %1405
    %v1408 = vmul.f32 %v1401, %v1406
    %1410 = vrot.lane.b32.xlu0 %v1408, 32
    %v1411 = vpop.permute.xlu0 %1410
    %v1413 = vadd.f32 %v1403, %v1411
    %v1414 = vtanh.pop %v1413
    %1416 = vrot.lane.b32.xlu0 %v1414, 32
    %v1417 = vpop.permute.xlu0 %1416
    %v1419 = vmul.f32 %v1401, %v1417
    %v1420 = vmul.f32 %v1419, %v326
    %1422 = vrot.lane.b32.xlu0 %v1420, 64
    %v1423 = vpop.permute.xlu0 %1422
    %v1425 = vsel %vm333, %v1423, 0.0
    %1426 = vadd.xlane.f32.xlu0 %v1425
    %v1427 = vpop.xlane.xlu0 %1426
    %v1428 = vadd.f32 %v1427, %v77
    %v1429 = vmul.f32 %v1428, 0.5
    %v1430 = vtanh.pop %v1429
    %v1431 = vmul.f32 %v1430, 0.5
    %v1432 = vadd.f32 %v1431, 0.5
    %v1434 = vrot.slane %v1395, 1
    %v1435 = vrot.slane %v1395, 2
    %v1438 = vadd.f32 %v163, %v1434
    %v1439 = vadd.f32 %v168, %v1435
    %v1440 = vmul.f32 %v1438, 0.5
    %v1441 = vmul.f32 %v1439, 0.5
    %v1442 = vtanh.pop %v1440
    %v1443 = vtanh.pop %v1441
    %v1444 = vmul.f32 %v1442, 0.5
    %v1445 = vmul.f32 %v1443, 0.5
    %v1446 = vadd.f32 %v1444, 0.5
    %v1447 = vadd.f32 %v1445, 0.5
    %v1448 = vtanh.pop %v1438
    %v1449 = vtanh.pop %v1439
    %v1452 = vrot.slane %v1294, 7
    %v1453 = vrot.slane %v1295, 7
    %v1456 = vmul.f32 %v1446, %v1452
    %v1457 = vmul.f32 %v1447, %v1453
    %1460 = vrot.lane.b32.xlu0 %v1448, 32
    %v1461 = vpop.permute.xlu0 %1460
    %1462 = vrot.lane.b32.xlu0 %v1449, 32
    %v1463 = vpop.permute.xlu0 %1462
    %v1466 = vmul.f32 %v1446, %v1461
    %v1467 = vmul.f32 %v1447, %v1463
    %1470 = vrot.lane.b32.xlu0 %v1466, 32
    %v1471 = vpop.permute.xlu0 %1470
    %1472 = vrot.lane.b32.xlu0 %v1467, 32
    %v1473 = vpop.permute.xlu0 %1472
    %v1476 = vadd.f32 %v1456, %v1471
    %v1477 = vadd.f32 %v1457, %v1473
    %v1478 = vtanh.pop %v1476
    %v1479 = vtanh.pop %v1477
    %1482 = vrot.lane.b32.xlu0 %v1478, 32
    %v1483 = vpop.permute.xlu0 %1482
    %1484 = vrot.lane.b32.xlu0 %v1479, 32
    %v1485 = vpop.permute.xlu0 %1484
    %v1488 = vmul.f32 %v1446, %v1483
    %v1489 = vmul.f32 %v1447, %v1485
    %v1492 = vrot.slane %v1489, 7
    %1493 = vrot.lane.b32.xlu0 %v1488, 64
    %v1494 = vpop.permute.xlu0 %1493
    %1495 = vrot.lane.b32.xlu0 %v1492, 64
    %v1496 = vpop.permute.xlu0 %1495
    %v1500 = vrot.slane %v1419, 1
    %1501 = vrot.lane.b32.xlu0 %v1500, 96
    %v1502 = vpop.permute.xlu0 %1501
    %v1504 = vsel %vm225, %v1494, %v1502
    %v1505 = vsel %vm225, %v1496, %v1502
    %vm1508 = vcmask 1040384
    %v1509 = vrot.slane %v1504, 7
    %v1510 = vrot.slane %v1505, 7
    %v1511 = vsel %vm1508, %v1509, %v1510
    %v1512 = vsel %vm227, %v1511, 0
    %1514 = vmatprep.subr.mxu0 %v44
    %1515 = vmatpush1.msra.mxu0 %v43
    %1516 = vmatprep.subr.mxu0 %v46
    %1517 = vmatpush1.msra.mxu0 %v45
    %1518 = vmatprep.subr.mxu0 %v48
    %1519 = vmatpush1.msra.mxu0 %v47
    %1520 = vmatprep.subr.mxu0 %v50
    %1521 = vmatpush1.msra.mxu0 %v49
    %1522 = vmatprep.subr.mxu0 %v52
    %1523 = vmatpush1.msra.mxu0 %v51
    %1524 = vmatprep.subr.mxu0 %v54
    %1525 = vmatpush1.msra.mxu0 %v53
    %1526 = vmatprep.subr.mxu0 %v56
    %1527 = vmatpush1.msra.mxu0 %v55
    %1528 = vmatprep.subr.mxu0 %v58
    %1529 = vmatpush1.msra.mxu0 %v57
    %1530 = vmatprep.subr.mxu0 0.0
    %1531 = vmatpush1.msra.mxu0 0.0
    %1532 = vmatprep.subr.mxu0 0.0
    %1533 = vmatpush1.msra.mxu0 0.0
    %1534 = vmatprep.subr.mxu0 0.0
    %1535 = vmatpush1.msra.mxu0 0.0
    %1536 = vmatprep.subr.mxu0 0.0
    %1537 = vmatpush1.msra.mxu0 0.0
    %1538 = vmatprep.subr.mxu0 0.0
    %1539 = vmatpush1.msra.mxu0 0.0
    %1540 = vmatprep.subr.mxu0 0.0
    %1541 = vmatpush1.msra.mxu0 0.0
    %1542 = vmatprep.subr.mxu0 0.0
    %1543 = vmatpush1.msra.mxu0 0.0
    %1544 = vmatprep.subr.mxu0 0.0
    %1545 = vmatpush1.msra.mxu0 0.0
    %1546 = vmatprep.subr.mxu0 0.0
    %1547 = vmatpush1.msra.mxu0 0.0
    %1548 = vmatprep.subr.mxu0 0.0
    %1549 = vmatpush1.msra.mxu0 0.0
    %1550 = vmatprep.subr.mxu0 0.0
    %1551 = vmatpush1.msra.mxu0 0.0
    %1552 = vmatprep.subr.mxu0 0.0
    %1553 = vmatpush1.msra.mxu0 0.0
    %1554 = vmatprep.subr.mxu0 0.0
    %1555 = vmatpush1.msra.mxu0 0.0
    %1556 = vmatprep.subr.mxu0 0.0
    %1557 = vmatpush1.msra.mxu0 0.0
    %1558 = vmatprep.subr.mxu0 0.0
    %1559 = vmatpush1.msra.mxu0 0.0
    %1560 = vmatprep.subr.mxu0 0.0
    %1561 = vmatpush1.msra.mxu0 0.0
    %1562 = vmatprep.subr.mxu0 0.0
    %1563 = vmatpush1.msra.mxu0 0.0
    %1564 = vmatprep.subr.mxu0 0.0
    %1565 = vmatpush1.msra.mxu0 0.0
    %1566 = vmatprep.subr.mxu0 0.0
    %1567 = vmatpush1.msra.mxu0 0.0
    %1568 = vmatprep.subr.mxu0 0.0
    %1569 = vmatpush1.msra.mxu0 0.0
    %1570 = vmatprep.subr.mxu0 0.0
    %1571 = vmatpush1.msra.mxu0 0.0
    %1572 = vmatprep.subr.mxu0 0.0
    %1573 = vmatpush1.msra.mxu0 0.0
    %1574 = vmatprep.subr.mxu0 0.0
    %1575 = vmatpush1.msra.mxu0 0.0
    %1576 = vmatprep.subr.mxu0 0.0
    %1577 = vmatpush1.msra.mxu0 0.0
    %1578 = vmatprep.mubr.f32.mxu0 0.0
    %1579 = vmatmul.mubr.f32.gmra.mrb[0].mxu0 %v1512
    %v1580 = vpop.f32.mrb[0].mxu0
    %v1581 = vadd.f32 0.0, %v1580
    %v1582 = vpop.f32.mrb[0].mxu0
    %1583 = vdwg.mxu0
    %v1584 = vadd.f32 %v1581, %v64
    %v1585 = vmul.f32 %v1584, 0.5
    %v1586 = vtanh.pop %v1585
    %v1587 = vmul.f32 %v1586, 0.5
    %v1588 = vadd.f32 %v1587, 0.5
    %v1589 = vtanh.pop %v1584
    %v1590 = vmul.f32 %v1588, %v1413
    %1592 = vrot.lane.b32.xlu0 %v1589, 32
    %v1593 = vpop.permute.xlu0 %1592
    %v1595 = vmul.f32 %v1588, %v1593
    %1597 = vrot.lane.b32.xlu0 %v1595, 32
    %v1598 = vpop.permute.xlu0 %1597
    %v1600 = vadd.f32 %v1590, %v1598
    %v1601 = vtanh.pop %v1600
    %1603 = vrot.lane.b32.xlu0 %v1601, 32
    %v1604 = vpop.permute.xlu0 %1603
    %v1606 = vmul.f32 %v1588, %v1604
    %v1607 = vmul.f32 %v1606, %v326
    %1609 = vrot.lane.b32.xlu0 %v1607, 64
    %v1610 = vpop.permute.xlu0 %1609
    %v1612 = vsel %vm333, %v1610, 0.0
    %1613 = vadd.xlane.f32.xlu0 %v1612
    %v1614 = vpop.xlane.xlu0 %1613
    %v1615 = vadd.f32 %v1614, %v77
    %v1616 = vmul.f32 %v1615, 0.5
    %v1617 = vtanh.pop %v1616
    %v1618 = vmul.f32 %v1617, 0.5
    %v1619 = vadd.f32 %v1618, 0.5
    %1621 = vrot.lane.b32.xlu0 %v522, 1
    %v1622 = vpop.permute.xlu0 %1621
    %1625 = vrot.lane.b32.xlu0 %v704, 2
    %v1626 = vpop.permute.xlu0 %1625
    %1629 = vrot.lane.b32.xlu0 %v886, 3
    %v1630 = vpop.permute.xlu0 %1629
    %1633 = vrot.lane.b32.xlu0 %v1068, 4
    %v1634 = vpop.permute.xlu0 %1633
    %1637 = vrot.lane.b32.xlu0 %v1250, 5
    %v1638 = vpop.permute.xlu0 %1637
    %1641 = vrot.lane.b32.xlu0 %v1432, 6
    %v1642 = vpop.permute.xlu0 %1641
    %1645 = vrot.lane.b32.xlu0 %v1619, 7
    %v1646 = vpop.permute.xlu0 %1645
    %vm1648 = vcmask 7168
    %v1649 = vsel %vm1648, %v341, %v1622
    %vm1650 = vcmask 15360
    %v1651 = vsel %vm1650, %v1649, %v1626
    %vm1652 = vcmask 23552
    %v1653 = vsel %vm1652, %v1651, %v1630
    %vm1654 = vcmask 31744
    %v1655 = vsel %vm1654, %v1653, %v1634
    %vm1656 = vcmask 39936
    %v1657 = vsel %vm1656, %v1655, %v1638
    %vm1658 = vcmask 48128
    %v1659 = vsel %vm1658, %v1657, %v1642
    %vm1660 = vcmask 56320
    %v1661 = vsel %vm1660, %v1659, %v1646
    %vm1662 = vcmask 58368
    %1663 = vst.msk [vmem:[#allocation6] sm:$0x3] %vm1662, %v1661
    // Predicated region
    $region34: #{discriminator_forward.1} parent=1 // pred_check
      _
    $region35: #{discriminator_forward.1} parent=1 // pred_check_branch
      %1665 = sbr.rel (0) target = $region37
    $region36: #{discriminator_forward.1} parent=1 // pred_region
      %s1667 = ssub.s32 32, 32
      %1668 = vsyncadd [#allocation5], %s1667
      %s1670 = sshll.u32 [#allocation6], 4
      %s1671 = int_to_ptr.vmem [resolvable:$true] %s1670
      %1673 = dma.vmem_to_hbm [thread:$0]  %s1671, 32, %s7, [#allocation5]
    $region37: #{discriminator_forward.1} parent=1 // pred_fallthru
      _
    // Predicated region
    $region38: #{discriminator_forward.1} parent=1 // pred_check
      _
    $region39: #{discriminator_forward.1} parent=1 // pred_check_branch
      %1675 = sbr.rel (0) target = $region41
    $region40: #{discriminator_forward.1} parent=1 // pred_region
      %1676 = dma.done [#allocation5], 32
    $region41: #{discriminator_forward.1} parent=1 // pred_fallthru
      _
    %1677 = vsyncpa [#allocation4], 1
    %1678 = vsyncpa [#allocation5], 1

</llo_original>
